<compile_context>
chip_gen: v5e
topology: v5e:2x2
jax: 0.10.0
libtpu: 0.0.40
codegen_flags: <defaults>
</compile_context>

<pallas_src>
import functools

import jax
import jax.numpy as jnp
from jax import lax
from jax.experimental import pallas as pl
from jax.experimental.pallas import tpu as pltpu

EPS = 1e-5


# ---------------------------------------------------------------------------
# In-kernel helpers
# ---------------------------------------------------------------------------
def _lanes(ref, bt):
    """Concatenate the bt samples of a (bt, C, L) block along lanes -> (C, bt*L)."""
    parts = [ref[b] for b in range(bt)]            # static unroll, 2-D loads
    return parts[0] if bt == 1 else jnp.concatenate(parts, axis=1)


def _moments(c):
    """Per-channel [sum, sum_sq] over the lane (row-space) axis -> (1, C, 2) f32."""
    s = jnp.sum(c, axis=1, keepdims=True)
    q = jnp.sum(c * c, axis=1, keepdims=True)
    return jnp.concatenate([s, q], axis=1)[None]


# ---------------------------------------------------------------------------
# Stage kernels (all operate on (C, bt*L) slabs; channels on sublanes)
# ---------------------------------------------------------------------------
def _stage1_kernel(x_ref, w1_ref, wi_ref, s1_ref, si_ref):
    # statistics for bn1 and for the identity-path BN (conv biases cancel).
    bt = x_ref.shape[0]
    x = _lanes(x_ref, bt).astype(jnp.bfloat16)                       # (Cin, bt*L)
    c1 = jnp.dot(w1_ref[...], x, preferred_element_type=jnp.float32)  # (W, bt*L)
    ci = jnp.dot(wi_ref[...], x, preferred_element_type=jnp.float32)  # (Cout, bt*L)
    s1_ref[...] = _moments(c1)
    si_ref[...] = _moments(ci)


def _stage2_kernel(x_ref, w1_ref, a_ref, b_ref, w2_ref, h2_ref, s2_ref):
    # bn1 apply + relu, conv2 (3 taps fused into one K=3W matmul), bn2 stats.
    bt, _, length = x_ref.shape
    x = _lanes(x_ref, bt).astype(jnp.bfloat16)
    c1 = jnp.dot(w1_ref[...], x, preferred_element_type=jnp.float32)
    y1 = jnp.maximum(c1 * a_ref[...] + b_ref[...], 0.0)             # (W, bt*L) f32

    width = y1.shape[0]
    zcol = jnp.zeros((width, 1), jnp.float32)
    lefts, rights = [], []
    for b in range(bt):                                             # static unroll
        ys = y1[:, b * length:(b + 1) * length]                     # one sample
        lefts.append(jnp.concatenate([zcol, ys[:, :length - 1]], axis=1))
        rights.append(jnp.concatenate([ys[:, 1:], zcol], axis=1))
    left = lefts[0] if bt == 1 else jnp.concatenate(lefts, axis=1)
    right = rights[0] if bt == 1 else jnp.concatenate(rights, axis=1)

    taps = jnp.concatenate([left, y1, right], axis=0).astype(jnp.bfloat16)  # (3W, bt*L)
    c2 = jnp.dot(w2_ref[...], taps, preferred_element_type=jnp.float32)     # (W, bt*L)

    for b in range(bt):
        h2_ref[b] = c2[:, b * length:(b + 1) * length].astype(h2_ref.dtype)
    s2_ref[...] = _moments(c2)


def _stage3_kernel(h2_ref, a_ref, b_ref, w3_ref, h3_ref, s3_ref):
    # bn2 apply + relu, conv3, bn3 stats.
    bt, _, length = h2_ref.shape
    h2 = _lanes(h2_ref, bt).astype(jnp.float32)
    y2 = jnp.maximum(h2 * a_ref[...] + b_ref[...], 0.0).astype(jnp.bfloat16)
    c3 = jnp.dot(w3_ref[...], y2, preferred_element_type=jnp.float32)        # (Cout, bt*L)
    for b in range(bt):
        h3_ref[b] = c3[:, b * length:(b + 1) * length].astype(h3_ref.dtype)
    s3_ref[...] = _moments(c3)


def _stage4_kernel(x_ref, h3_ref, wi_ref, a3_ref, b3_ref, ai_ref, bi_ref, o_ref):
    # bn3 apply, identity conv + BN apply, residual add, relu -> NCL output.
    bt, _, length = x_ref.shape
    x = _lanes(x_ref, bt).astype(jnp.bfloat16)
    idn = jnp.dot(wi_ref[...], x, preferred_element_type=jnp.float32)
    idn = idn * ai_ref[...] + bi_ref[...]
    y3 = _lanes(h3_ref, bt).astype(jnp.float32) * a3_ref[...] + b3_ref[...]
    out = jnp.maximum(y3 + idn, 0.0)
    for b in range(bt):
        o_ref[b] = out[:, b * length:(b + 1) * length].astype(o_ref.dtype)


# ---------------------------------------------------------------------------
# Wrapper
# ---------------------------------------------------------------------------
def _mosaic_params():
    return pltpu.CompilerParams(
        dimension_semantics=("parallel",),            # megacore sharding on v7x
        vmem_limit_bytes=32 * 1024 * 1024,            # explicit; fits v7x/v5e
    )


def _full_spec(shape):
    nd = len(shape)
    return pl.BlockSpec(shape, lambda i: (0,) * nd)   # resident across the grid


def _pick_bt(n, length, target_rows, max_bt=8):
    """Samples per block: divisor of N, unrolled small, ~target_rows lanes/tile."""
    bt = 1
    for cand in range(1, min(n, max_bt) + 1):
        if n % cand == 0 and cand * length <= max(target_rows, length):
            bt = cand
    return bt


def _scale_shift(stats, gamma, beta, count):
    """Fold per-tile [sum, sumsq] into training-mode BN scale/shift (f32, (C,1))."""
    tot = jnp.sum(stats, axis=0)                       # (C, 2)
    mean = tot[:, 0] / count
    var = jnp.maximum(tot[:, 1] / count - mean * mean, 0.0)
    scale = gamma * lax.rsqrt(var + EPS)
    shift = beta - mean * scale
    return (scale.astype(jnp.float32).reshape(-1, 1),
            shift.astype(jnp.float32).reshape(-1, 1))


def bottleneck_forward(x_ncl, params, *, target_rows=512):
    n, cin, length = x_ncl.shape
    width = params["w1"].shape[0]
    cout = params["w3"].shape[0]

    bt = _pick_bt(n, length, target_rows)
    nt = n // bt
    count = n * length
    f32, bf16 = jnp.float32, jnp.bfloat16

    # Conv weights in (out, in) matmul layout, bf16 for the MXU.  Conv biases
    # are dropped: under training-mode BatchNorm they cancel exactly.
    w1 = params["w1"][:, :, 0].astype(bf16)                                    # (W, Cin)
    w2 = jnp.concatenate([params["w2"][:, :, k] for k in range(3)],
                         axis=1).astype(bf16)                                  # (W, 3W)
    w3 = params["w3"][:, :, 0].astype(bf16)                                    # (Cout, W)
    wi = params["wi"][:, :, 0].astype(bf16)                                    # (Cout, Cin)

    x_spec = pl.BlockSpec((bt, cin, length), lambda i: (i, 0, 0))
    h2_spec = pl.BlockSpec((bt, width, length), lambda i: (i, 0, 0))
    h3_spec = pl.BlockSpec((bt, cout, length), lambda i: (i, 0, 0))
    out_spec = pl.BlockSpec((bt, cout, length), lambda i: (i, 0, 0))

    def stat_spec(c):
        return pl.BlockSpec((1, c, 2), lambda i: (i, 0, 0))

    def stat_shape(c):
        return jax.ShapeDtypeStruct((nt, c, 2), f32)

    # ---- stage 1: bn1 / identity-bn statistics ------------------------------
    s1, si = pl.pallas_call(
        _stage1_kernel,
        grid=(nt,),
        in_specs=[x_spec, _full_spec(w1.shape), _full_spec(wi.shape)],
        out_shape=(stat_shape(width), stat_shape(cout)),
        out_specs=(stat_spec(width), stat_spec(cout)),
        compiler_params=_mosaic_params(),
    )(x_ncl, w1, wi)
    sc1, sh1 = _scale_shift(s1, params["g1"], params["be1"], count)
    sci, shi = _scale_shift(si, params["gi"], params["bei"], count)

    # ---- stage 2: bn1 + relu + conv2 (fused taps) + bn2 stats ---------------
    h2, s2 = pl.pallas_call(
        _stage2_kernel,
        grid=(nt,),
        in_specs=[x_spec, _full_spec(w1.shape), _full_spec(sc1.shape),
                  _full_spec(sh1.shape), _full_spec(w2.shape)],
        out_shape=(jax.ShapeDtypeStruct((n, width, length), bf16),
                   stat_shape(width)),
        out_specs=(h2_spec, stat_spec(width)),
        compiler_params=_mosaic_params(),
    )(x_ncl, w1, sc1, sh1, w2)
    sc2, sh2 = _scale_shift(s2, params["g2"], params["be2"], count)

    # ---- stage 3: bn2 + relu + conv3 + bn3 stats ----------------------------
    h3, s3 = pl.pallas_call(
        _stage3_kernel,
        grid=(nt,),
        in_specs=[h2_spec, _full_spec(sc2.shape), _full_spec(sh2.shape),
                  _full_spec(w3.shape)],
        out_shape=(jax.ShapeDtypeStruct((n, cout, length), bf16),
                   stat_shape(cout)),
        out_specs=(h3_spec, stat_spec(cout)),
        compiler_params=_mosaic_params(),
    )(h2, sc2, sh2, w3)
    sc3, sh3 = _scale_shift(s3, params["g3"], params["be3"], count)

    # ---- stage 4: bn3 + identity conv/bn + residual add + relu --------------
    out = pl.pallas_call(
        _stage4_kernel,
        grid=(nt,),
        in_specs=[x_spec, h3_spec, _full_spec(wi.shape), _full_spec(sc3.shape),
                  _full_spec(sh3.shape), _full_spec(sci.shape),
                  _full_spec(shi.shape)],
        out_shape=jax.ShapeDtypeStruct((n, cout, length), f32),
        out_specs=out_spec,
        compiler_params=_mosaic_params(),
    )(x_ncl, h3, wi, sc3, sh3, sci, shi)
    return out


# ---------------------------------------------------------------------------
# Pure-JAX reference (mirrors the PyTorch module exactly, all f32)
# ---------------------------------------------------------------------------
def _conv1d_ref(x, w, b, padding):
    y = lax.conv_general_dilated(x, w, window_strides=(1,),
                                 padding=[(padding, padding)],
                                 dimension_numbers=("NCH", "OIH", "NCH"))
    return y + b[None, :, None]


def _bn_train_ref(x, gamma, beta):
    mu = jnp.mean(x, axis=(0, 2), keepdims=True)
    var = jnp.mean((x - mu) ** 2, axis=(0, 2), keepdims=True)
    return (x - mu) * lax.rsqrt(var + EPS) * gamma[None, :, None] + beta[None, :, None]


def bottleneck_ref(x, p):
    out = _conv1d_ref(x, p["w1"], p["b1"], 0)
    out = jnp.maximum(_bn_train_ref(out, p["g1"], p["be1"]), 0.0)
    out = _conv1d_ref(out, p["w2"], p["b2"], 1)
    out = jnp.maximum(_bn_train_ref(out, p["g2"], p["be2"]), 0.0)
    out = _conv1d_ref(out, p["w3"], p["b3"], 0)
    out = _bn_train_ref(out, p["g3"], p["be3"])
    idn = _conv1d_ref(x, p["wi"], p["bi"], 0)
    idn = _bn_train_ref(idn, p["gi"], p["bei"])
    return jnp.maximum(out + idn, 0.0)


# ---------------------------------------------------------------------------
def make_params(key, inplanes, planes, base_width=64):
    width = int(planes * (base_width / 64.0))
    cout = planes * 4  # expansion = 4
    ks = jax.random.split(key, 16)

    def rnd(k, shape, scale=0.2):
        return scale * jax.random.normal(k, shape, dtype=jnp.float32)

    return dict(
        w1=rnd(ks[0], (width, inplanes, 1)), b1=rnd(ks[1], (width,)),
        g1=1.0 + rnd(ks[2], (width,), 0.1), be1=rnd(ks[3], (width,), 0.1),
        w2=rnd(ks[4], (width, width, 3)), b2=rnd(ks[5], (width,)),
        g2=1.0 + rnd(ks[6], (width,), 0.1), be2=rnd(ks[7], (width,), 0.1),
        w3=rnd(ks[8], (cout, width, 1)), b3=rnd(ks[9], (cout,)),
        g3=1.0 + rnd(ks[10], (cout,), 0.1), be3=rnd(ks[11], (cout,), 0.1),
        wi=rnd(ks[12], (cout, inplanes, 1)), bi=rnd(ks[13], (cout,)),
        gi=1.0 + rnd(ks[14], (cout,), 0.1), bei=rnd(ks[15], (cout,), 0.1),
    )


if __name__ == "__main__":
    # small shapes: batch=4, inplanes=8, planes=4 (-> width=4, out_channels=16), L=16
    inplanes, planes, n, length = 8, 4, 4, 16
    key = jax.random.PRNGKey(0)
    kx, kp = jax.random.split(key)
    x = jax.random.normal(kx, (n, inplanes, length), dtype=jnp.float32)  # NCL
    params = make_params(kp, inplanes, planes)

    # target_rows=32 -> bt=2 samples/block, 2 grid tiles: exercises both the
    # multi-sample unrolled path and the cross-tile statistics reduction.
    fwd = jax.jit(functools.partial(bottleneck_forward, target_rows=32))
    out = jax.block_until_ready(fwd(x, params))
    ref = jax.block_until_ready(bottleneck_ref(x, params))

    assert out.shape == (n, planes * 4, length), out.shape
    assert bool(jnp.all(jnp.isfinite(out)))
    # bf16 MXU operands vs f32 reference (variance-amplified at these tiny
    # widths) -> loosened tolerance; any structural/stat bug gives O(1) errors.
    assert jnp.allclose(out, ref, atol=1e-1, rtol=1e-1), \
        float(jnp.max(jnp.abs(out - ref)))
    print("KERNEL_OK")
</pallas_src>

<mosaic_0001>
module attributes {stable_mosaic.version = 11 : i64} {
  func.func @_stage1_kernel(%arg0: i32, %arg1: memref<2x8x16xf32, #tpu.memory_space<vmem>>, %arg2: memref<4x8xbf16, #tpu.memory_space<vmem>>, %arg3: memref<16x8xbf16, #tpu.memory_space<vmem>>, %arg4: memref<1x4x2xf32, #tpu.memory_space<vmem>>, %arg5: memref<1x16x2xf32, #tpu.memory_space<vmem>>) attributes {dimension_semantics = [#tpu.dimension_semantics<parallel>], iteration_bounds = array<i64: 2>, scalar_prefetch = 0 : i64, scratch_operands = 0 : i64, tpu.core_type = #tpu.core_type<tc>, window_params = [{transform_indices = @transform_0, window_bounds = array<i64: 2, 8, 16>}, {pipeline_mode = #tpu.pipeline_mode<synchronous>, transform_indices = @transform_1, window_bounds = array<i64: 4, 8>}, {pipeline_mode = #tpu.pipeline_mode<synchronous>, transform_indices = @transform_2, window_bounds = array<i64: 16, 8>}, {transform_indices = @transform_3, window_bounds = array<i64: 1, 4, 2>}, {transform_indices = @transform_4, window_bounds = array<i64: 1, 16, 2>}]} {
    %c0 = arith.constant 0 : index
    %c0_0 = arith.constant 0 : index
    %c0_1 = arith.constant 0 : index
    %0 = vector.load %arg1[%c0, %c0_0, %c0_1] : memref<2x8x16xf32, #tpu.memory_space<vmem>>, vector<1x8x16xf32>
    %1 = vector.shape_cast %0 : vector<1x8x16xf32> to vector<8x16xf32>
    %c1 = arith.constant 1 : index
    %c0_2 = arith.constant 0 : index
    %c0_3 = arith.constant 0 : index
    %2 = vector.load %arg1[%c1, %c0_2, %c0_3] : memref<2x8x16xf32, #tpu.memory_space<vmem>>, vector<1x8x16xf32>
    %3 = vector.shape_cast %2 : vector<1x8x16xf32> to vector<8x16xf32>
    %4 = tpu.concatenate %1, %3 in 1 : vector<8x16xf32>, vector<8x16xf32> -> vector<8x32xf32>
    %5 = arith.truncf %4 : vector<8x32xf32> to vector<8x32xbf16>
    %c0_4 = arith.constant 0 : index
    %c0_5 = arith.constant 0 : index
    %6 = vector.load %arg2[%c0_4, %c0_5] : memref<4x8xbf16, #tpu.memory_space<vmem>>, vector<4x8xbf16>
    %cst = arith.constant dense<0.000000e+00> : vector<4x32xf32>
    %7 = tpu.matmul %6, %5, %cst {dimension_numbers = #tpu.dot_dimension_numbers<[1], [0], [0], [1], [0, 0, 1, 1], [], []>} : vector<4x8xbf16>, vector<8x32xbf16>, vector<4x32xf32> -> vector<4x32xf32>
    %c0_6 = arith.constant 0 : index
    %c0_7 = arith.constant 0 : index
    %8 = vector.load %arg3[%c0_6, %c0_7] : memref<16x8xbf16, #tpu.memory_space<vmem>>, vector<16x8xbf16>
    %cst_8 = arith.constant dense<0.000000e+00> : vector<16x32xf32>
    %9 = tpu.matmul %8, %5, %cst_8 {dimension_numbers = #tpu.dot_dimension_numbers<[1], [0], [0], [1], [0, 0, 1, 1], [], []>} : vector<16x8xbf16>, vector<8x32xbf16>, vector<16x32xf32> -> vector<16x32xf32>
    %cst_9 = arith.constant dense<0.000000e+00> : vector<4xf32>
    %10 = vector.multi_reduction <add>, %7, %cst_9 [1] : vector<4x32xf32> to vector<4xf32>
    %11 = vector.shape_cast %10 : vector<4xf32> to vector<4x1xf32>
    %12 = arith.mulf %7, %7 : vector<4x32xf32>
    %cst_10 = arith.constant dense<0.000000e+00> : vector<4xf32>
    %13 = vector.multi_reduction <add>, %12, %cst_10 [1] : vector<4x32xf32> to vector<4xf32>
    %14 = vector.shape_cast %13 : vector<4xf32> to vector<4x1xf32>
    %15 = tpu.concatenate %11, %14 in 1 : vector<4x1xf32>, vector<4x1xf32> -> vector<4x2xf32>
    %16 = vector.shape_cast %15 : vector<4x2xf32> to vector<1x4x2xf32>
    %c0_11 = arith.constant 0 : index
    %c0_12 = arith.constant 0 : index
    %c0_13 = arith.constant 0 : index
    %17 = vector.load %arg4[%c0_11, %c0_12, %c0_13] : memref<1x4x2xf32, #tpu.memory_space<vmem>>, vector<1x4x2xf32>
    tpu.vector_store %arg4[%c0_11, %c0_12, %c0_13], %16 {strides = array<i32>} : memref<1x4x2xf32, #tpu.memory_space<vmem>>, vector<1x4x2xf32>,
    %cst_14 = arith.constant dense<0.000000e+00> : vector<16xf32>
    %18 = vector.multi_reduction <add>, %9, %cst_14 [1] : vector<16x32xf32> to vector<16xf32>
    %19 = vector.shape_cast %18 : vector<16xf32> to vector<16x1xf32>
    %20 = arith.mulf %9, %9 : vector<16x32xf32>
    %cst_15 = arith.constant dense<0.000000e+00> : vector<16xf32>
    %21 = vector.multi_reduction <add>, %20, %cst_15 [1] : vector<16x32xf32> to vector<16xf32>
    %22 = vector.shape_cast %21 : vector<16xf32> to vector<16x1xf32>
    %23 = tpu.concatenate %19, %22 in 1 : vector<16x1xf32>, vector<16x1xf32> -> vector<16x2xf32>
    %24 = vector.shape_cast %23 : vector<16x2xf32> to vector<1x16x2xf32>
    %c0_16 = arith.constant 0 : index
    %c0_17 = arith.constant 0 : index
    %c0_18 = arith.constant 0 : index
    %25 = vector.load %arg5[%c0_16, %c0_17, %c0_18] : memref<1x16x2xf32, #tpu.memory_space<vmem>>, vector<1x16x2xf32>
    tpu.vector_store %arg5[%c0_16, %c0_17, %c0_18], %24 {strides = array<i32>} : memref<1x16x2xf32, #tpu.memory_space<vmem>>, vector<1x16x2xf32>,
    return
  }
  func.func @transform_0(%arg0: i32) -> (i32, i32, i32) {
    %c0_i32 = arith.constant 0 : i32
    %c0_i32_0 = arith.constant 0 : i32
    %c0_i32_1 = arith.constant 0 : i32
    return %arg0, %c0_i32, %c0_i32_0 : i32, i32, i32
  }
  func.func @transform_1(%arg0: i32) -> (i32, i32) {
    %c0_i32 = arith.constant 0 : i32
    %c0_i32_0 = arith.constant 0 : i32
    %c0_i32_1 = arith.constant 0 : i32
    return %c0_i32, %c0_i32_0 : i32, i32
  }
  func.func @transform_2(%arg0: i32) -> (i32, i32) {
    %c0_i32 = arith.constant 0 : i32
    %c0_i32_0 = arith.constant 0 : i32
    %c0_i32_1 = arith.constant 0 : i32
    return %c0_i32, %c0_i32_0 : i32, i32
  }
  func.func @transform_3(%arg0: i32) -> (i32, i32, i32) {
    %c0_i32 = arith.constant 0 : i32
    %c0_i32_0 = arith.constant 0 : i32
    %c0_i32_1 = arith.constant 0 : i32
    return %arg0, %c0_i32, %c0_i32_0 : i32, i32, i32
  }
  func.func @transform_4(%arg0: i32) -> (i32, i32, i32) {
    %c0_i32 = arith.constant 0 : i32
    %c0_i32_0 = arith.constant 0 : i32
    %c0_i32_1 = arith.constant 0 : i32
    return %arg0, %c0_i32, %c0_i32_0 : i32, i32, i32
  }
}

module attributes {stable_mosaic.version = 11 : i64} {
  func.func @_stage2_kernel(%arg0: i32, %arg1: memref<2x8x16xf32, #tpu.memory_space<vmem>>, %arg2: memref<4x8xbf16, #tpu.memory_space<vmem>>, %arg3: memref<4x1xf32, #tpu.memory_space<vmem>>, %arg4: memref<4x1xf32, #tpu.memory_space<vmem>>, %arg5: memref<4x12xbf16, #tpu.memory_space<vmem>>, %arg6: memref<2x4x16xbf16, #tpu.memory_space<vmem>>, %arg7: memref<1x4x2xf32, #tpu.memory_space<vmem>>) attributes {dimension_semantics = [#tpu.dimension_semantics<parallel>], iteration_bounds = array<i64: 2>, scalar_prefetch = 0 : i64, scratch_operands = 0 : i64, tpu.core_type = #tpu.core_type<tc>, window_params = [{transform_indices = @transform_0, window_bounds = array<i64: 2, 8, 16>}, {pipeline_mode = #tpu.pipeline_mode<synchronous>, transform_indices = @transform_1, window_bounds = array<i64: 4, 8>}, {pipeline_mode = #tpu.pipeline_mode<synchronous>, transform_indices = @transform_2, window_bounds = array<i64: 4, 1>}, {pipeline_mode = #tpu.pipeline_mode<synchronous>, transform_indices = @transform_3, window_bounds = array<i64: 4, 1>}, {pipeline_mode = #tpu.pipeline_mode<synchronous>, transform_indices = @transform_4, window_bounds = array<i64: 4, 12>}, {transform_indices = @transform_5, window_bounds = array<i64: 2, 4, 16>}, {transform_indices = @transform_6, window_bounds = array<i64: 1, 4, 2>}]} {
    %c0 = arith.constant 0 : index
    %c0_0 = arith.constant 0 : index
    %c0_1 = arith.constant 0 : index
    %0 = vector.load %arg1[%c0, %c0_0, %c0_1] : memref<2x8x16xf32, #tpu.memory_space<vmem>>, vector<1x8x16xf32>
    %1 = vector.shape_cast %0 : vector<1x8x16xf32> to vector<8x16xf32>
    %c1 = arith.constant 1 : index
    %c0_2 = arith.constant 0 : index
    %c0_3 = arith.constant 0 : index
    %2 = vector.load %arg1[%c1, %c0_2, %c0_3] : memref<2x8x16xf32, #tpu.memory_space<vmem>>, vector<1x8x16xf32>
    %3 = vector.shape_cast %2 : vector<1x8x16xf32> to vector<8x16xf32>
    %4 = tpu.concatenate %1, %3 in 1 : vector<8x16xf32>, vector<8x16xf32> -> vector<8x32xf32>
    %5 = arith.truncf %4 : vector<8x32xf32> to vector<8x32xbf16>
    %c0_4 = arith.constant 0 : index
    %c0_5 = arith.constant 0 : index
    %6 = vector.load %arg2[%c0_4, %c0_5] : memref<4x8xbf16, #tpu.memory_space<vmem>>, vector<4x8xbf16>
    %cst = arith.constant dense<0.000000e+00> : vector<4x32xf32>
    %7 = tpu.matmul %6, %5, %cst {dimension_numbers = #tpu.dot_dimension_numbers<[1], [0], [0], [1], [0, 0, 1, 1], [], []>} : vector<4x8xbf16>, vector<8x32xbf16>, vector<4x32xf32> -> vector<4x32xf32>
    %c0_6 = arith.constant 0 : index
    %c0_7 = arith.constant 0 : index
    %8 = vector.load %arg3[%c0_6, %c0_7] : memref<4x1xf32, #tpu.memory_space<vmem>>, vector<4x1xf32>
    %9 = vector.broadcast %8 : vector<4x1xf32> to vector<4x32xf32>
    %10 = arith.mulf %7, %9 : vector<4x32xf32>
    %c0_8 = arith.constant 0 : index
    %c0_9 = arith.constant 0 : index
    %11 = vector.load %arg4[%c0_8, %c0_9] : memref<4x1xf32, #tpu.memory_space<vmem>>, vector<4x1xf32>
    %12 = vector.broadcast %11 : vector<4x1xf32> to vector<4x32xf32>
    %13 = arith.addf %10, %12 : vector<4x32xf32>
    %cst_10 = arith.constant 0.000000e+00 : f32
    %14 = vector.broadcast %cst_10 : f32 to vector<4x32xf32>
    %15 = arith.maximumf %13, %14 : vector<4x32xf32>
    %cst_11 = arith.constant 0.000000e+00 : f32
    %16 = vector.broadcast %cst_11 : f32 to vector<4x1xf32>
    %17 = vector.extract_strided_slice %15 {offsets = [0, 0], sizes = [4, 16], strides = [1, 1]} : vector<4x32xf32> to vector<4x16xf32>
    %18 = vector.extract_strided_slice %17 {offsets = [0, 0], sizes = [4, 15], strides = [1, 1]} : vector<4x16xf32> to vector<4x15xf32>
    %19 = tpu.concatenate %16, %18 in 1 : vector<4x1xf32>, vector<4x15xf32> -> vector<4x16xf32>
    %20 = vector.extract_strided_slice %17 {offsets = [0, 1], sizes = [4, 15], strides = [1, 1]} : vector<4x16xf32> to vector<4x15xf32>
    %21 = tpu.concatenate %20, %16 in 1 : vector<4x15xf32>, vector<4x1xf32> -> vector<4x16xf32>
    %22 = vector.extract_strided_slice %15 {offsets = [0, 16], sizes = [4, 16], strides = [1, 1]} : vector<4x32xf32> to vector<4x16xf32>
    %23 = vector.extract_strided_slice %22 {offsets = [0, 0], sizes = [4, 15], strides = [1, 1]} : vector<4x16xf32> to vector<4x15xf32>
    %24 = tpu.concatenate %16, %23 in 1 : vector<4x1xf32>, vector<4x15xf32> -> vector<4x16xf32>
    %25 = vector.extract_strided_slice %22 {offsets = [0, 1], sizes = [4, 15], strides = [1, 1]} : vector<4x16xf32> to vector<4x15xf32>
    %26 = tpu.concatenate %25, %16 in 1 : vector<4x15xf32>, vector<4x1xf32> -> vector<4x16xf32>
    %27 = tpu.concatenate %19, %24 in 1 : vector<4x16xf32>, vector<4x16xf32> -> vector<4x32xf32>
    %28 = tpu.concatenate %21, %26 in 1 : vector<4x16xf32>, vector<4x16xf32> -> vector<4x32xf32>
    %29 = tpu.concatenate %27, %15, %28 in 0 : vector<4x32xf32>, vector<4x32xf32>, vector<4x32xf32> -> vector<12x32xf32>
    %30 = arith.truncf %29 : vector<12x32xf32> to vector<12x32xbf16>
    %c0_12 = arith.constant 0 : index
    %c0_13 = arith.constant 0 : index
    %31 = vector.load %arg5[%c0_12, %c0_13] : memref<4x12xbf16, #tpu.memory_space<vmem>>, vector<4x12xbf16>
    %cst_14 = arith.constant dense<0.000000e+00> : vector<4x32xf32>
    %32 = tpu.matmul %31, %30, %cst_14 {dimension_numbers = #tpu.dot_dimension_numbers<[1], [0], [0], [1], [0, 0, 1, 1], [], []>} : vector<4x12xbf16>, vector<12x32xbf16>, vector<4x32xf32> -> vector<4x32xf32>
    %33 = vector.extract_strided_slice %32 {offsets = [0, 0], sizes = [4, 16], strides = [1, 1]} : vector<4x32xf32> to vector<4x16xf32>
    %34 = arith.truncf %33 : vector<4x16xf32> to vector<4x16xbf16>
    %c0_15 = arith.constant 0 : index
    %c0_16 = arith.constant 0 : index
    %c0_17 = arith.constant 0 : index
    %35 = vector.load %arg6[%c0_15, %c0_16, %c0_17] : memref<2x4x16xbf16, #tpu.memory_space<vmem>>, vector<1x4x16xbf16>
    %36 = vector.shape_cast %35 : vector<1x4x16xbf16> to vector<4x16xbf16>
    %37 = vector.shape_cast %34 : vector<4x16xbf16> to vector<1x4x16xbf16>
    tpu.vector_store %arg6[%c0_15, %c0_16, %c0_17], %37 {strides = array<i32>} : memref<2x4x16xbf16, #tpu.memory_space<vmem>>, vector<1x4x16xbf16>,
    %38 = vector.extract_strided_slice %32 {offsets = [0, 16], sizes = [4, 16], strides = [1, 1]} : vector<4x32xf32> to vector<4x16xf32>
    %39 = arith.truncf %38 : vector<4x16xf32> to vector<4x16xbf16>
    %c1_18 = arith.constant 1 : index
    %c0_19 = arith.constant 0 : index
    %c0_20 = arith.constant 0 : index
    %40 = vector.load %arg6[%c1_18, %c0_19, %c0_20] : memref<2x4x16xbf16, #tpu.memory_space<vmem>>, vector<1x4x16xbf16>
    %41 = vector.shape_cast %40 : vector<1x4x16xbf16> to vector<4x16xbf16>
    %42 = vector.shape_cast %39 : vector<4x16xbf16> to vector<1x4x16xbf16>
    tpu.vector_store %arg6[%c1_18, %c0_19, %c0_20], %42 {strides = array<i32>} : memref<2x4x16xbf16, #tpu.memory_space<vmem>>, vector<1x4x16xbf16>,
    %cst_21 = arith.constant dense<0.000000e+00> : vector<4xf32>
    %43 = vector.multi_reduction <add>, %32, %cst_21 [1] : vector<4x32xf32> to vector<4xf32>
    %44 = vector.shape_cast %43 : vector<4xf32> to vector<4x1xf32>
    %45 = arith.mulf %32, %32 : vector<4x32xf32>
    %cst_22 = arith.constant dense<0.000000e+00> : vector<4xf32>
    %46 = vector.multi_reduction <add>, %45, %cst_22 [1] : vector<4x32xf32> to vector<4xf32>
    %47 = vector.shape_cast %46 : vector<4xf32> to vector<4x1xf32>
    %48 = tpu.concatenate %44, %47 in 1 : vector<4x1xf32>, vector<4x1xf32> -> vector<4x2xf32>
    %49 = vector.shape_cast %48 : vector<4x2xf32> to vector<1x4x2xf32>
    %c0_23 = arith.constant 0 : index
    %c0_24 = arith.constant 0 : index
    %c0_25 = arith.constant 0 : index
    %50 = vector.load %arg7[%c0_23, %c0_24, %c0_25] : memref<1x4x2xf32, #tpu.memory_space<vmem>>, vector<1x4x2xf32>
    tpu.vector_store %arg7[%c0_23, %c0_24, %c0_25], %49 {strides = array<i32>} : memref<1x4x2xf32, #tpu.memory_space<vmem>>, vector<1x4x2xf32>,
    return
  }
  func.func @transform_0(%arg0: i32) -> (i32, i32, i32) {
    %c0_i32 = arith.constant 0 : i32
    %c0_i32_0 = arith.constant 0 : i32
    %c0_i32_1 = arith.constant 0 : i32
    return %arg0, %c0_i32, %c0_i32_0 : i32, i32, i32
  }
  func.func @transform_1(%arg0: i32) -> (i32, i32) {
    %c0_i32 = arith.constant 0 : i32
    %c0_i32_0 = arith.constant 0 : i32
    %c0_i32_1 = arith.constant 0 : i32
    return %c0_i32, %c0_i32_0 : i32, i32
  }
  func.func @transform_2(%arg0: i32) -> (i32, i32) {
    %c0_i32 = arith.constant 0 : i32
    %c0_i32_0 = arith.constant 0 : i32
    %c0_i32_1 = arith.constant 0 : i32
    return %c0_i32, %c0_i32_0 : i32, i32
  }
  func.func @transform_3(%arg0: i32) -> (i32, i32) {
    %c0_i32 = arith.constant 0 : i32
    %c0_i32_0 = arith.constant 0 : i32
    %c0_i32_1 = arith.constant 0 : i32
    return %c0_i32, %c0_i32_0 : i32, i32
  }
  func.func @transform_4(%arg0: i32) -> (i32, i32) {
    %c0_i32 = arith.constant 0 : i32
    %c0_i32_0 = arith.constant 0 : i32
    %c0_i32_1 = arith.constant 0 : i32
    return %c0_i32, %c0_i32_0 : i32, i32
  }
  func.func @transform_5(%arg0: i32) -> (i32, i32, i32) {
    %c0_i32 = arith.constant 0 : i32
    %c0_i32_0 = arith.constant 0 : i32
    %c0_i32_1 = arith.constant 0 : i32
    return %arg0, %c0_i32, %c0_i32_0 : i32, i32, i32
  }
  func.func @transform_6(%arg0: i32) -> (i32, i32, i32) {
    %c0_i32 = arith.constant 0 : i32
    %c0_i32_0 = arith.constant 0 : i32
    %c0_i32_1 = arith.constant 0 : i32
    return %arg0, %c0_i32, %c0_i32_0 : i32, i32, i32
  }
}

module attributes {stable_mosaic.version = 11 : i64} {
  func.func @_stage4_kernel(%arg0: i32, %arg1: memref<2x8x16xf32, #tpu.memory_space<vmem>>, %arg2: memref<2x16x16xbf16, #tpu.memory_space<vmem>>, %arg3: memref<16x8xbf16, #tpu.memory_space<vmem>>, %arg4: memref<16x1xf32, #tpu.memory_space<vmem>>, %arg5: memref<16x1xf32, #tpu.memory_space<vmem>>, %arg6: memref<16x1xf32, #tpu.memory_space<vmem>>, %arg7: memref<16x1xf32, #tpu.memory_space<vmem>>, %arg8: memref<2x16x16xf32, #tpu.memory_space<vmem>>) attributes {dimension_semantics = [#tpu.dimension_semantics<parallel>], iteration_bounds = array<i64: 2>, scalar_prefetch = 0 : i64, scratch_operands = 0 : i64, tpu.core_type = #tpu.core_type<tc>, window_params = [{transform_indices = @transform_0, window_bounds = array<i64: 2, 8, 16>}, {transform_indices = @transform_1, window_bounds = array<i64: 2, 16, 16>}, {pipeline_mode = #tpu.pipeline_mode<synchronous>, transform_indices = @transform_2, window_bounds = array<i64: 16, 8>}, {pipeline_mode = #tpu.pipeline_mode<synchronous>, transform_indices = @transform_3, window_bounds = array<i64: 16, 1>}, {pipeline_mode = #tpu.pipeline_mode<synchronous>, transform_indices = @transform_4, window_bounds = array<i64: 16, 1>}, {pipeline_mode = #tpu.pipeline_mode<synchronous>, transform_indices = @transform_5, window_bounds = array<i64: 16, 1>}, {pipeline_mode = #tpu.pipeline_mode<synchronous>, transform_indices = @transform_6, window_bounds = array<i64: 16, 1>}, {transform_indices = @transform_7, window_bounds = array<i64: 2, 16, 16>}]} {
    %c0 = arith.constant 0 : index
    %c0_0 = arith.constant 0 : index
    %c0_1 = arith.constant 0 : index
    %0 = vector.load %arg1[%c0, %c0_0, %c0_1] : memref<2x8x16xf32, #tpu.memory_space<vmem>>, vector<1x8x16xf32>
    %1 = vector.shape_cast %0 : vector<1x8x16xf32> to vector<8x16xf32>
    %c1 = arith.constant 1 : index
    %c0_2 = arith.constant 0 : index
    %c0_3 = arith.constant 0 : index
    %2 = vector.load %arg1[%c1, %c0_2, %c0_3] : memref<2x8x16xf32, #tpu.memory_space<vmem>>, vector<1x8x16xf32>
    %3 = vector.shape_cast %2 : vector<1x8x16xf32> to vector<8x16xf32>
    %4 = tpu.concatenate %1, %3 in 1 : vector<8x16xf32>, vector<8x16xf32> -> vector<8x32xf32>
    %5 = arith.truncf %4 : vector<8x32xf32> to vector<8x32xbf16>
    %c0_4 = arith.constant 0 : index
    %c0_5 = arith.constant 0 : index
    %6 = vector.load %arg3[%c0_4, %c0_5] : memref<16x8xbf16, #tpu.memory_space<vmem>>, vector<16x8xbf16>
    %cst = arith.constant dense<0.000000e+00> : vector<16x32xf32>
    %7 = tpu.matmul %6, %5, %cst {dimension_numbers = #tpu.dot_dimension_numbers<[1], [0], [0], [1], [0, 0, 1, 1], [], []>} : vector<16x8xbf16>, vector<8x32xbf16>, vector<16x32xf32> -> vector<16x32xf32>
    %c0_6 = arith.constant 0 : index
    %c0_7 = arith.constant 0 : index
    %8 = vector.load %arg6[%c0_6, %c0_7] : memref<16x1xf32, #tpu.memory_space<vmem>>, vector<16x1xf32>
    %9 = vector.broadcast %8 : vector<16x1xf32> to vector<16x32xf32>
    %10 = arith.mulf %7, %9 : vector<16x32xf32>
    %c0_8 = arith.constant 0 : index
    %c0_9 = arith.constant 0 : index
    %11 = vector.load %arg7[%c0_8, %c0_9] : memref<16x1xf32, #tpu.memory_space<vmem>>, vector<16x1xf32>
    %12 = vector.broadcast %11 : vector<16x1xf32> to vector<16x32xf32>
    %13 = arith.addf %10, %12 : vector<16x32xf32>
    %c0_10 = arith.constant 0 : index
    %c0_11 = arith.constant 0 : index
    %c0_12 = arith.constant 0 : index
    %14 = vector.load %arg2[%c0_10, %c0_11, %c0_12] : memref<2x16x16xbf16, #tpu.memory_space<vmem>>, vector<1x16x16xbf16>
    %15 = vector.shape_cast %14 : vector<1x16x16xbf16> to vector<16x16xbf16>
    %c1_13 = arith.constant 1 : index
    %c0_14 = arith.constant 0 : index
    %c0_15 = arith.constant 0 : index
    %16 = vector.load %arg2[%c1_13, %c0_14, %c0_15] : memref<2x16x16xbf16, #tpu.memory_space<vmem>>, vector<1x16x16xbf16>
    %17 = vector.shape_cast %16 : vector<1x16x16xbf16> to vector<16x16xbf16>
    %18 = tpu.concatenate %15, %17 in 1 : vector<16x16xbf16>, vector<16x16xbf16> -> vector<16x32xbf16>
    %19 = arith.extf %18 : vector<16x32xbf16> to vector<16x32xf32>
    %c0_16 = arith.constant 0 : index
    %c0_17 = arith.constant 0 : index
    %20 = vector.load %arg4[%c0_16, %c0_17] : memref<16x1xf32, #tpu.memory_space<vmem>>, vector<16x1xf32>
    %21 = vector.broadcast %20 : vector<16x1xf32> to vector<16x32xf32>
    %22 = arith.mulf %19, %21 : vector<16x32xf32>
    %c0_18 = arith.constant 0 : index
    %c0_19 = arith.constant 0 : index
    %23 = vector.load %arg5[%c0_18, %c0_19] : memref<16x1xf32, #tpu.memory_space<vmem>>, vector<16x1xf32>
    %24 = vector.broadcast %23 : vector<16x1xf32> to vector<16x32xf32>
    %25 = arith.addf %22, %24 : vector<16x32xf32>
    %26 = arith.addf %25, %13 : vector<16x32xf32>
    %cst_20 = arith.constant 0.000000e+00 : f32
    %27 = vector.broadcast %cst_20 : f32 to vector<16x32xf32>
    %28 = arith.maximumf %26, %27 : vector<16x32xf32>
    %29 = vector.extract_strided_slice %28 {offsets = [0, 0], sizes = [16, 16], strides = [1, 1]} : vector<16x32xf32> to vector<16x16xf32>
    %c0_21 = arith.constant 0 : index
    %c0_22 = arith.constant 0 : index
    %c0_23 = arith.constant 0 : index
    %30 = vector.load %arg8[%c0_21, %c0_22, %c0_23] : memref<2x16x16xf32, #tpu.memory_space<vmem>>, vector<1x16x16xf32>
    %31 = vector.shape_cast %30 : vector<1x16x16xf32> to vector<16x16xf32>
    %32 = vector.shape_cast %29 : vector<16x16xf32> to vector<1x16x16xf32>
    tpu.vector_store %arg8[%c0_21, %c0_22, %c0_23], %32 {strides = array<i32>} : memref<2x16x16xf32, #tpu.memory_space<vmem>>, vector<1x16x16xf32>,
    %33 = vector.extract_strided_slice %28 {offsets = [0, 16], sizes = [16, 16], strides = [1, 1]} : vector<16x32xf32> to vector<16x16xf32>
    %c1_24 = arith.constant 1 : index
    %c0_25 = arith.constant 0 : index
    %c0_26 = arith.constant 0 : index
    %34 = vector.load %arg8[%c1_24, %c0_25, %c0_26] : memref<2x16x16xf32, #tpu.memory_space<vmem>>, vector<1x16x16xf32>
    %35 = vector.shape_cast %34 : vector<1x16x16xf32> to vector<16x16xf32>
    %36 = vector.shape_cast %33 : vector<16x16xf32> to vector<1x16x16xf32>
    tpu.vector_store %arg8[%c1_24, %c0_25, %c0_26], %36 {strides = array<i32>} : memref<2x16x16xf32, #tpu.memory_space<vmem>>, vector<1x16x16xf32>,
    return
  }
  func.func @transform_0(%arg0: i32) -> (i32, i32, i32) {
    %c0_i32 = arith.constant 0 : i32
    %c0_i32_0 = arith.constant 0 : i32
    %c0_i32_1 = arith.constant 0 : i32
    return %arg0, %c0_i32, %c0_i32_0 : i32, i32, i32
  }
  func.func @transform_1(%arg0: i32) -> (i32, i32, i32) {
    %c0_i32 = arith.constant 0 : i32
    %c0_i32_0 = arith.constant 0 : i32
    %c0_i32_1 = arith.constant 0 : i32
    return %arg0, %c0_i32, %c0_i32_0 : i32, i32, i32
  }
  func.func @transform_2(%arg0: i32) -> (i32, i32) {
    %c0_i32 = arith.constant 0 : i32
    %c0_i32_0 = arith.constant 0 : i32
    %c0_i32_1 = arith.constant 0 : i32
    return %c0_i32, %c0_i32_0 : i32, i32
  }
  func.func @transform_3(%arg0: i32) -> (i32, i32) {
    %c0_i32 = arith.constant 0 : i32
    %c0_i32_0 = arith.constant 0 : i32
    %c0_i32_1 = arith.constant 0 : i32
    return %c0_i32, %c0_i32_0 : i32, i32
  }
  func.func @transform_4(%arg0: i32) -> (i32, i32) {
    %c0_i32 = arith.constant 0 : i32
    %c0_i32_0 = arith.constant 0 : i32
    %c0_i32_1 = arith.constant 0 : i32
    return %c0_i32, %c0_i32_0 : i32, i32
  }
  func.func @transform_5(%arg0: i32) -> (i32, i32) {
    %c0_i32 = arith.constant 0 : i32
    %c0_i32_0 = arith.constant 0 : i32
    %c0_i32_1 = arith.constant 0 : i32
    return %c0_i32, %c0_i32_0 : i32, i32
  }
  func.func @transform_6(%arg0: i32) -> (i32, i32) {
    %c0_i32 = arith.constant 0 : i32
    %c0_i32_0 = arith.constant 0 : i32
    %c0_i32_1 = arith.constant 0 : i32
    return %c0_i32, %c0_i32_0 : i32, i32
  }
  func.func @transform_7(%arg0: i32) -> (i32, i32, i32) {
    %c0_i32 = arith.constant 0 : i32
    %c0_i32_0 = arith.constant 0 : i32
    %c0_i32_1 = arith.constant 0 : i32
    return %arg0, %c0_i32, %c0_i32_0 : i32, i32, i32
  }
}

module attributes {stable_mosaic.version = 11 : i64} {
  func.func @_stage3_kernel(%arg0: i32, %arg1: memref<2x4x16xbf16, #tpu.memory_space<vmem>>, %arg2: memref<4x1xf32, #tpu.memory_space<vmem>>, %arg3: memref<4x1xf32, #tpu.memory_space<vmem>>, %arg4: memref<16x4xbf16, #tpu.memory_space<vmem>>, %arg5: memref<2x16x16xbf16, #tpu.memory_space<vmem>>, %arg6: memref<1x16x2xf32, #tpu.memory_space<vmem>>) attributes {dimension_semantics = [#tpu.dimension_semantics<parallel>], iteration_bounds = array<i64: 2>, scalar_prefetch = 0 : i64, scratch_operands = 0 : i64, tpu.core_type = #tpu.core_type<tc>, window_params = [{transform_indices = @transform_0, window_bounds = array<i64: 2, 4, 16>}, {pipeline_mode = #tpu.pipeline_mode<synchronous>, transform_indices = @transform_1, window_bounds = array<i64: 4, 1>}, {pipeline_mode = #tpu.pipeline_mode<synchronous>, transform_indices = @transform_2, window_bounds = array<i64: 4, 1>}, {pipeline_mode = #tpu.pipeline_mode<synchronous>, transform_indices = @transform_3, window_bounds = array<i64: 16, 4>}, {transform_indices = @transform_4, window_bounds = array<i64: 2, 16, 16>}, {transform_indices = @transform_5, window_bounds = array<i64: 1, 16, 2>}]} {
    %c0 = arith.constant 0 : index
    %c0_0 = arith.constant 0 : index
    %c0_1 = arith.constant 0 : index
    %0 = vector.load %arg1[%c0, %c0_0, %c0_1] : memref<2x4x16xbf16, #tpu.memory_space<vmem>>, vector<1x4x16xbf16>
    %1 = vector.shape_cast %0 : vector<1x4x16xbf16> to vector<4x16xbf16>
    %c1 = arith.constant 1 : index
    %c0_2 = arith.constant 0 : index
    %c0_3 = arith.constant 0 : index
    %2 = vector.load %arg1[%c1, %c0_2, %c0_3] : memref<2x4x16xbf16, #tpu.memory_space<vmem>>, vector<1x4x16xbf16>
    %3 = vector.shape_cast %2 : vector<1x4x16xbf16> to vector<4x16xbf16>
    %4 = tpu.concatenate %1, %3 in 1 : vector<4x16xbf16>, vector<4x16xbf16> -> vector<4x32xbf16>
    %5 = arith.extf %4 : vector<4x32xbf16> to vector<4x32xf32>
    %c0_4 = arith.constant 0 : index
    %c0_5 = arith.constant 0 : index
    %6 = vector.load %arg2[%c0_4, %c0_5] : memref<4x1xf32, #tpu.memory_space<vmem>>, vector<4x1xf32>
    %7 = vector.broadcast %6 : vector<4x1xf32> to vector<4x32xf32>
    %8 = arith.mulf %5, %7 : vector<4x32xf32>
    %c0_6 = arith.constant 0 : index
    %c0_7 = arith.constant 0 : index
    %9 = vector.load %arg3[%c0_6, %c0_7] : memref<4x1xf32, #tpu.memory_space<vmem>>, vector<4x1xf32>
    %10 = vector.broadcast %9 : vector<4x1xf32> to vector<4x32xf32>
    %11 = arith.addf %8, %10 : vector<4x32xf32>
    %cst = arith.constant 0.000000e+00 : f32
    %12 = vector.broadcast %cst : f32 to vector<4x32xf32>
    %13 = arith.maximumf %11, %12 : vector<4x32xf32>
    %14 = arith.truncf %13 : vector<4x32xf32> to vector<4x32xbf16>
    %c0_8 = arith.constant 0 : index
    %c0_9 = arith.constant 0 : index
    %15 = vector.load %arg4[%c0_8, %c0_9] : memref<16x4xbf16, #tpu.memory_space<vmem>>, vector<16x4xbf16>
    %cst_10 = arith.constant dense<0.000000e+00> : vector<16x32xf32>
    %16 = tpu.matmul %15, %14, %cst_10 {dimension_numbers = #tpu.dot_dimension_numbers<[1], [0], [0], [1], [0, 0, 1, 1], [], []>} : vector<16x4xbf16>, vector<4x32xbf16>, vector<16x32xf32> -> vector<16x32xf32>
    %17 = vector.extract_strided_slice %16 {offsets = [0, 0], sizes = [16, 16], strides = [1, 1]} : vector<16x32xf32> to vector<16x16xf32>
    %18 = arith.truncf %17 : vector<16x16xf32> to vector<16x16xbf16>
    %c0_11 = arith.constant 0 : index
    %c0_12 = arith.constant 0 : index
    %c0_13 = arith.constant 0 : index
    %19 = vector.load %arg5[%c0_11, %c0_12, %c0_13] : memref<2x16x16xbf16, #tpu.memory_space<vmem>>, vector<1x16x16xbf16>
    %20 = vector.shape_cast %19 : vector<1x16x16xbf16> to vector<16x16xbf16>
    %21 = vector.shape_cast %18 : vector<16x16xbf16> to vector<1x16x16xbf16>
    tpu.vector_store %arg5[%c0_11, %c0_12, %c0_13], %21 {strides = array<i32>} : memref<2x16x16xbf16, #tpu.memory_space<vmem>>, vector<1x16x16xbf16>,
    %22 = vector.extract_strided_slice %16 {offsets = [0, 16], sizes = [16, 16], strides = [1, 1]} : vector<16x32xf32> to vector<16x16xf32>
    %23 = arith.truncf %22 : vector<16x16xf32> to vector<16x16xbf16>
    %c1_14 = arith.constant 1 : index
    %c0_15 = arith.constant 0 : index
    %c0_16 = arith.constant 0 : index
    %24 = vector.load %arg5[%c1_14, %c0_15, %c0_16] : memref<2x16x16xbf16, #tpu.memory_space<vmem>>, vector<1x16x16xbf16>
    %25 = vector.shape_cast %24 : vector<1x16x16xbf16> to vector<16x16xbf16>
    %26 = vector.shape_cast %23 : vector<16x16xbf16> to vector<1x16x16xbf16>
    tpu.vector_store %arg5[%c1_14, %c0_15, %c0_16], %26 {strides = array<i32>} : memref<2x16x16xbf16, #tpu.memory_space<vmem>>, vector<1x16x16xbf16>,
    %cst_17 = arith.constant dense<0.000000e+00> : vector<16xf32>
    %27 = vector.multi_reduction <add>, %16, %cst_17 [1] : vector<16x32xf32> to vector<16xf32>
    %28 = vector.shape_cast %27 : vector<16xf32> to vector<16x1xf32>
    %29 = arith.mulf %16, %16 : vector<16x32xf32>
    %cst_18 = arith.constant dense<0.000000e+00> : vector<16xf32>
    %30 = vector.multi_reduction <add>, %29, %cst_18 [1] : vector<16x32xf32> to vector<16xf32>
    %31 = vector.shape_cast %30 : vector<16xf32> to vector<16x1xf32>
    %32 = tpu.concatenate %28, %31 in 1 : vector<16x1xf32>, vector<16x1xf32> -> vector<16x2xf32>
    %33 = vector.shape_cast %32 : vector<16x2xf32> to vector<1x16x2xf32>
    %c0_19 = arith.constant 0 : index
    %c0_20 = arith.constant 0 : index
    %c0_21 = arith.constant 0 : index
    %34 = vector.load %arg6[%c0_19, %c0_20, %c0_21] : memref<1x16x2xf32, #tpu.memory_space<vmem>>, vector<1x16x2xf32>
    tpu.vector_store %arg6[%c0_19, %c0_20, %c0_21], %33 {strides = array<i32>} : memref<1x16x2xf32, #tpu.memory_space<vmem>>, vector<1x16x2xf32>,
    return
  }
  func.func @transform_0(%arg0: i32) -> (i32, i32, i32) {
    %c0_i32 = arith.constant 0 : i32
    %c0_i32_0 = arith.constant 0 : i32
    %c0_i32_1 = arith.constant 0 : i32
    return %arg0, %c0_i32, %c0_i32_0 : i32, i32, i32
  }
  func.func @transform_1(%arg0: i32) -> (i32, i32) {
    %c0_i32 = arith.constant 0 : i32
    %c0_i32_0 = arith.constant 0 : i32
    %c0_i32_1 = arith.constant 0 : i32
    return %c0_i32, %c0_i32_0 : i32, i32
  }
  func.func @transform_2(%arg0: i32) -> (i32, i32) {
    %c0_i32 = arith.constant 0 : i32
    %c0_i32_0 = arith.constant 0 : i32
    %c0_i32_1 = arith.constant 0 : i32
    return %c0_i32, %c0_i32_0 : i32, i32
  }
  func.func @transform_3(%arg0: i32) -> (i32, i32) {
    %c0_i32 = arith.constant 0 : i32
    %c0_i32_0 = arith.constant 0 : i32
    %c0_i32_1 = arith.constant 0 : i32
    return %c0_i32, %c0_i32_0 : i32, i32
  }
  func.func @transform_4(%arg0: i32) -> (i32, i32, i32) {
    %c0_i32 = arith.constant 0 : i32
    %c0_i32_0 = arith.constant 0 : i32
    %c0_i32_1 = arith.constant 0 : i32
    return %arg0, %c0_i32, %c0_i32_0 : i32, i32, i32
  }
  func.func @transform_5(%arg0: i32) -> (i32, i32, i32) {
    %c0_i32 = arith.constant 0 : i32
    %c0_i32_0 = arith.constant 0 : i32
    %c0_i32_1 = arith.constant 0 : i32
    return %arg0, %c0_i32, %c0_i32_0 : i32, i32, i32
  }
}

</mosaic_0001>

<llo_original>
// kernel: bottleneck_forward.4
$region0: #{bottleneck_forward.4}
  #allocation0 [shape = 'u32[]', space=smem, size = 0x4, offset = 0x4, fixed_abs, tag = 'smem constant byte address 0x4 - core index']
  #allocation1 [shape = 'u32[72,128]{1,0:T(1,128)}', space=vmem, size = 0x9000, scoped, tag = 'internal scratch']
  %s0 = inlined_call_operand.vmem [shape: f32[4,8,16], index: 0, kind: input, shape index: {}]
  %s1 = inlined_call_operand.vmem [shape: bf16[4,8], index: 1, kind: input, shape index: {}]
  %s2 = inlined_call_operand.vmem [shape: bf16[16,8], index: 2, kind: input, shape index: {}]
  %s3 = inlined_call_operand.vmem [shape: f32[2,4,2], index: 3, kind: output, shape index: {0}]
  %s4 = inlined_call_operand.vmem [shape: f32[2,16,2], index: 4, kind: output, shape index: {1}]
  %5 = xla_tuple %s3, %s4
  %s6 = sld [smem:[#allocation0]]
  $region53: #{bottleneck_forward.4} parent=0
    _
  %s8 = ssub.s32 1, %s6
  %s9 = scalar_select 0, %s8, %s6
  loop: start=0, step=1, limit=4
  $region2: #{bottleneck_forward.4} parent=0 // loop_pre_header
    _
  $region3: #{bottleneck_forward.4} parent=0 // loop_header
    %s11 = sphi 0, %s15
    %p12 = scmp.ge.s32.totalorder %s11, 4
    %s21 = sphi 0, %s23
    %s24 = sphi 0, %s21
    %s25 = sphi 0, %s24
    %s41 = sphi 0, %s25
    %s45 = sphi 0, %s45
    %s47 = sphi 0, %s45
    %s48 = sphi 0, %s47
    %s62 = sphi 0, %s48
    %s66 = sphi 0, %s66
    %s68 = sphi 0, %s66
    %s69 = sphi 0, %s68
    %s83 = sphi 0, %s69
    %s89 = sphi 0, %s91
    %s92 = sphi 0, %s89
    %s93 = sphi 0, %s92
    %s109 = sphi 0, %s93
    %s115 = sphi 0, %s117
    %s118 = sphi 0, %s115
    %s119 = sphi 0, %s118
    %s135 = sphi 0, %s119
  $region4: #{bottleneck_forward.4} parent=0 // loop_header_branch
    %14 = sbr.rel (%p12) target = $region8
  $region5: #{bottleneck_forward.4} parent=0 // loop_body
    %s16 = ssub.s32 %s11, 1
    %s17 = ssub.s32 %s11, 2
    %s18 = sadd.s32 %s11, 1
    %s19 = ssub.s32 %s11, %s18
    %p20 = scmp.eq.s32.totalorder %s19, 0
    %s22 = sadd.s32 %s21, 1
    %s23 = scalar_select %p20, %s21, %s22
    %p26 = pneg %p20
    %p27 = scmp.eq.s32.totalorder %s11, 1
    %p28 = por %p26, %p27
    %p29 = scmp.ne.s32.totalorder %s21, %s24
    %p30 = scmp.eq.s32.totalorder %s11, 0
    %p31 = por %p29, %p30
    %p32 = scmp.ne.s32.totalorder %s21, %s24
    %p33 = scmp.eq.s32.totalorder %s16, 1
    %p34 = por %p32, %p33
    %p35 = scmp.ne.s32.totalorder %s24, %s25
    %p36 = scmp.eq.s32.totalorder %s16, 0
    %p37 = por %p35, %p36
    %p38 = scmp.ne.s32.totalorder %s24, %s25
    %p39 = scmp.eq.s32.totalorder %s17, 1
    %p40 = por %p38, %p39
    %p42 = scmp.ne.s32.totalorder %s25, %s41
    %p43 = scmp.eq.s32.totalorder %s17, 0
    %p44 = por %p42, %p43
    %s46 = sadd.s32 %s45, 1
    %p49 = scmp.eq.s32.totalorder %s11, 1
    %p50 = scmp.ne.s32.totalorder %s45, %s47
    %p51 = scmp.eq.s32.totalorder %s11, 0
    %p52 = por %p50, %p51
    %p53 = scmp.ne.s32.totalorder %s45, %s47
    %p54 = scmp.eq.s32.totalorder %s16, 1
    %p55 = por %p53, %p54
    %p56 = scmp.ne.s32.totalorder %s47, %s48
    %p57 = scmp.eq.s32.totalorder %s16, 0
    %p58 = por %p56, %p57
    %p59 = scmp.ne.s32.totalorder %s47, %s48
    %p60 = scmp.eq.s32.totalorder %s17, 1
    %p61 = por %p59, %p60
    %p63 = scmp.ne.s32.totalorder %s48, %s62
    %p64 = scmp.eq.s32.totalorder %s17, 0
    %p65 = por %p63, %p64
    %s67 = sadd.s32 %s66, 1
    %p70 = scmp.eq.s32.totalorder %s11, 1
    %p71 = scmp.ne.s32.totalorder %s66, %s68
    %p72 = scmp.eq.s32.totalorder %s11, 0
    %p73 = por %p71, %p72
    %p74 = scmp.ne.s32.totalorder %s66, %s68
    %p75 = scmp.eq.s32.totalorder %s16, 1
    %p76 = por %p74, %p75
    %p77 = scmp.ne.s32.totalorder %s68, %s69
    %p78 = scmp.eq.s32.totalorder %s16, 0
    %p79 = por %p77, %p78
    %p80 = scmp.ne.s32.totalorder %s68, %s69
    %p81 = scmp.eq.s32.totalorder %s17, 1
    %p82 = por %p80, %p81
    %p84 = scmp.ne.s32.totalorder %s69, %s83
    %p85 = scmp.eq.s32.totalorder %s17, 0
    %p86 = por %p84, %p85
    %s87 = ssub.s32 %s11, %s18
    %p88 = scmp.eq.s32.totalorder %s87, 0
    %s90 = sadd.s32 %s89, 1
    %s91 = scalar_select %p88, %s89, %s90
    %p94 = pneg %p88
    %p95 = scmp.eq.s32.totalorder %s11, 1
    %p96 = por %p94, %p95
    %p97 = scmp.ne.s32.totalorder %s89, %s92
    %p98 = scmp.eq.s32.totalorder %s11, 0
    %p99 = por %p97, %p98
    %p100 = scmp.ne.s32.totalorder %s89, %s92
    %p101 = scmp.eq.s32.totalorder %s16, 1
    %p102 = por %p100, %p101
    %p103 = scmp.ne.s32.totalorder %s92, %s93
    %p104 = scmp.eq.s32.totalorder %s16, 0
    %p105 = por %p103, %p104
    %p106 = scmp.ne.s32.totalorder %s92, %s93
    %p107 = scmp.eq.s32.totalorder %s17, 1
    %p108 = por %p106, %p107
    %p110 = scmp.ne.s32.totalorder %s93, %s109
    %p111 = scmp.eq.s32.totalorder %s17, 0
    %p112 = por %p110, %p111
    %s113 = ssub.s32 %s11, %s18
    %p114 = scmp.eq.s32.totalorder %s113, 0
    %s116 = sadd.s32 %s115, 1
    %s117 = scalar_select %p114, %s115, %s116
    %p120 = pneg %p114
    %p121 = scmp.eq.s32.totalorder %s11, 1
    %p122 = por %p120, %p121
    %p123 = scmp.ne.s32.totalorder %s115, %s118
    %p124 = scmp.eq.s32.totalorder %s11, 0
    %p125 = por %p123, %p124
    %p126 = scmp.ne.s32.totalorder %s115, %s118
    %p127 = scmp.eq.s32.totalorder %s16, 1
    %p128 = por %p126, %p127
    %p129 = scmp.ne.s32.totalorder %s118, %s119
    %p130 = scmp.eq.s32.totalorder %s16, 0
    %p131 = por %p129, %p130
    %p132 = scmp.ne.s32.totalorder %s118, %s119
    %p133 = scmp.eq.s32.totalorder %s17, 1
    %p134 = por %p132, %p133
    %p136 = scmp.ne.s32.totalorder %s119, %s135
    %p137 = scmp.eq.s32.totalorder %s17, 0
    %p138 = por %p136, %p137
    %p139 = scmp.le.s32.totalorder 1, %s11
    %p140 = scmp.lt.s32.totalorder %s11, 3
    %p141 = pnand %p139, %p140
    %p142 = pneg %p141
    // Predicated region
    $region9: #{bottleneck_forward.4} parent=5 // pred_check
      _
    $region10: #{bottleneck_forward.4} parent=5 // pred_check_branch
      %144 = sbr.rel (%p141) target = $region12
    $region11: #{bottleneck_forward.4} parent=5 // pred_region
      %s145 = ssub.s32 %s11, 1
      // Predicated region
      $region13: #{bottleneck_forward.4} parent=11 // pred_check
        %p146 = pneg %p58
      $region14: #{bottleneck_forward.4} parent=11 // pred_check_branch
        %148 = sbr.rel (%p146) target = $region16
      $region15: #{bottleneck_forward.4} parent=11 // pred_region
        _
      $region16: #{bottleneck_forward.4} parent=11 // pred_fallthru
        _
      // Predicated region
      $region17: #{bottleneck_forward.4} parent=11 // pred_check
        %p149 = pneg %p79
      $region18: #{bottleneck_forward.4} parent=11 // pred_check_branch
        %151 = sbr.rel (%p149) target = $region20
      $region19: #{bottleneck_forward.4} parent=11 // pred_region
        _
      $region20: #{bottleneck_forward.4} parent=11 // pred_fallthru
        _
    $region12: #{bottleneck_forward.4} parent=5 // pred_fallthru
      _
    %p152 = scmp.lt.s32.totalorder %s11, 2
    // Predicated region
    $region21: #{bottleneck_forward.4} parent=5 // pred_check
      %p153 = pneg %p152
    $region22: #{bottleneck_forward.4} parent=5 // pred_check_branch
      %155 = sbr.rel (%p153) target = $region24
    $region23: #{bottleneck_forward.4} parent=5 // pred_region
      // Predicated region
      $region25: #{bottleneck_forward.4} parent=23 // pred_check
        %p156 = pneg %p31
      $region26: #{bottleneck_forward.4} parent=23 // pred_check_branch
        %158 = sbr.rel (%p156) target = $region28
      $region27: #{bottleneck_forward.4} parent=23 // pred_region
        %s159 = smul.u32 2, %s11
        %p160 = scmp.lt.s32.totalorder %s159, 3
        %s161 = scalar_select %p160, %s159, 3
        %s162 = smul.addr %s161, 8
        %s163 = scalar_lea.vmem %s0, %s162
        %s164 = smul.u32 2, %s11
      $region28: #{bottleneck_forward.4} parent=23 // pred_fallthru
        _
    $region24: #{bottleneck_forward.4} parent=5 // pred_fallthru
      _
    %p165 = scmp.le.s32.totalorder 1, %s11
    %p166 = scmp.lt.s32.totalorder %s11, 3
    %p167 = pnand %p165, %p166
    %p168 = pneg %p167
    // Predicated region
    $region29: #{bottleneck_forward.4} parent=5 // pred_check
      _
    $region30: #{bottleneck_forward.4} parent=5 // pred_check_branch
      %170 = sbr.rel (%p167) target = $region32
    $region31: #{bottleneck_forward.4} parent=5 // pred_region
      %s171 = ssub.s32 %s11, 1
      %s172 = smul.u32 2, %s16
      %p173 = scmp.lt.s32.totalorder %s172, 3
      %s174 = scalar_select %p173, %s172, 3
      %s175 = smul.addr %s174, 8
      %s176 = scalar_lea.vmem %s0, %s175
      %p177 = pneg %p37
      %p178 = pneg %p34
      %p179 = pneg %p58
      %p180 = pneg %p55
      %p181 = pneg %p79
      %p182 = pneg %p76
      %p183 = pneg %p105
      %p184 = pneg %p102
      %p185 = scmp.lt.s32.totalorder %s16, 1
      %s186 = scalar_select %p185, %s16, 1
      %s187 = smul.addr %s186, 4
      %s188 = scalar_lea.vmem %s3, %s187
      %p189 = pneg %p131
      %p190 = pneg %p128
      %p191 = scmp.lt.s32.totalorder %s16, 1
      %s192 = scalar_select %p191, %s16, 1
      %s193 = smul.addr %s192, 2
      %s194 = smul.addr %s193, 8
      %s195 = scalar_lea.vmem %s4, %s194
      %s196 = smul.u32 2, %s16
      %p197 = scmp.lt.s32.totalorder %s196, 3
      %s198 = scalar_select %p197, %s196, 3
      %s199 = smul.addr %s198, 8
      %s200 = scalar_lea.vmem %s0, %s199
      %s201 = smul.u32 2, %s16
      %p202 = scmp.lt.s32.totalorder %s16, 1
      %s203 = scalar_select %p202, %s16, 1
      %s204 = smul.addr %s203, 4
      %s205 = scalar_lea.vmem %s3, %s204
      %p206 = scmp.lt.s32.totalorder %s16, 1
      %s207 = scalar_select %p206, %s16, 1
      %s208 = smul.addr %s207, 2
      %s209 = smul.addr %s208, 8
      %s210 = scalar_lea.vmem %s4, %s209
      %v212 = vld [vmem:[%s200] sm:$0xff]
      %s213 = scalar_lea.vmem %s200, 8
      %v214 = vld [vmem:[%s213] sm:$0xff]
      %216 = vrot.lane.b32.xlu0 %v214, 16
      %v217 = vpop.permute.xlu0 %216
      %vm219 = vcmask 130048
      %v220 = vsel %vm219, %v212, %v217
      %v221 = vpack.c.bf16 %v220, %v220
      %v222 = vld [vmem:[%s1] sm:$0x3]
      %vm223 = vcmask 64512
      %v225 = vsel %vm223, %v222, 0
      %vm227 = vcmask 1043456
      %v229 = vsel %vm227, %v221, 0
      %231 = vmatpush.bf16.msra.mxu0 0
      %232 = vmatpush.bf16.msra.mxu0 0
      %233 = vmatpush.bf16.msra.mxu0 0
      %234 = vmatpush.bf16.msra.mxu0 0
      %235 = vmatpush.bf16.msra.mxu0 0
      %236 = vmatpush.bf16.msra.mxu0 0
      %237 = vmatpush.bf16.msra.mxu0 0
      %238 = vmatpush.bf16.msra.mxu0 %v229
      %239 = vmatmul.bf16.gmra.mxu0 %v225
      %v240 = vpop.f32.mrf.mxu0
      %v241 = vadd.f32 0.0, %v240
      %v242 = vpop.f32.mrf.mxu0
      %243 = vdwg.mxu0
      %v244 = vld [vmem:[%s2] sm:$0xf]
      %v245 = vld [vmem:[%s2 + $0x4] sm:$0xf]
      %v248 = vunpack.c.l.b16 %v244
      %v249 = vunpack.c.l.b16 %v245
      %v250 = vpack.c.b16 %v249, %v248
      %v252 = vsel %vm223, %v250, 0
      %254 = vmatpush.bf16.msra.mxu0 0
      %255 = vmatpush.bf16.msra.mxu0 0
      %256 = vmatpush.bf16.msra.mxu0 0
      %257 = vmatpush.bf16.msra.mxu0 0
      %258 = vmatpush.bf16.msra.mxu0 0
      %259 = vmatpush.bf16.msra.mxu0 0
      %260 = vmatpush.bf16.msra.mxu0 0
      %261 = vmatpush.bf16.msra.mxu0 %v229
      %262 = vmatmul.bf16.gmra.mxu0 %v252
      %v263 = vpop.f32.mrf.mxu0
      %v264 = vadd.f32 0.0, %v263
      %v265 = vpop.f32.mrf.mxu0
      %v266 = vadd.f32 0.0, %v265
      %267 = vdwg.mxu0
      %vm268 = vcmask 257024
      %v269 = vsel %vm268, %v241, 0.0
      %270 = vadd.xlane.f32.xlu0 %v269
      %v271 = vpop.xlane.xlu0 %270
      %v272 = vmul.f32 %v241, %v241
      %v273 = vsel %vm268, %v272, 0.0
      %274 = vadd.xlane.f32.xlu0 %v273
      %v275 = vpop.xlane.xlu0 %274
      %vm276 = vcmask 7168
      %v277 = vsel %vm276, %v271, %v275
      %vm278 = vcmask 11264
      %279 = vst.msk [vmem:[%s205] sm:$0xf] %vm278, %v277
      %vm280 = vcmask 261120
      %v281 = vsel %vm280, %v264, 0.0
      %282 = vadd.xlane.f32.xlu0 %v281
      %v283 = vpop.xlane.xlu0 %282
      %v284 = vsel %vm280, %v266, 0.0
      %285 = vadd.xlane.f32.xlu0 %v284
      %v286 = vpop.xlane.xlu0 %285
      %v287 = vmul.f32 %v264, %v264
      %v288 = vmul.f32 %v266, %v266
      %v289 = vsel %vm280, %v287, 0.0
      %290 = vadd.xlane.f32.xlu0 %v289
      %v291 = vpop.xlane.xlu0 %290
      %v292 = vsel %vm280, %v288, 0.0
      %293 = vadd.xlane.f32.xlu0 %v292
      %v294 = vpop.xlane.xlu0 %293
      %v295 = vsel %vm276, %v283, %v291
      %v296 = vsel %vm276, %v286, %v294
      %vm297 = vcmask 15360
      %298 = vst.msk [vmem:[%s210] sm:$0xff] %vm297, %v295
      %299 = vst.msk [vmem:[%s210 + $0x8] sm:$0xff] %vm297, %v296
      %p300 = scmp.lt.s32.totalorder %s16, 1
      %s301 = scalar_select %p300, %s16, 1
      %s302 = smul.addr %s301, 4
      %s303 = scalar_lea.vmem %s3, %s302
      %p304 = scmp.lt.s32.totalorder %s16, 1
      %s305 = scalar_select %p304, %s16, 1
      %s306 = smul.addr %s305, 2
      %s307 = smul.addr %s306, 8
      %s308 = scalar_lea.vmem %s4, %s307
      // Predicated region
      $region33: #{bottleneck_forward.4} parent=31 // pred_check
        %p309 = pneg %p102
      $region34: #{bottleneck_forward.4} parent=31 // pred_check_branch
        %311 = sbr.rel (%p309) target = $region36
      $region35: #{bottleneck_forward.4} parent=31 // pred_region
        _
      $region36: #{bottleneck_forward.4} parent=31 // pred_fallthru
        _
      // Predicated region
      $region37: #{bottleneck_forward.4} parent=31 // pred_check
        %p312 = pneg %p128
      $region38: #{bottleneck_forward.4} parent=31 // pred_check_branch
        %314 = sbr.rel (%p312) target = $region40
      $region39: #{bottleneck_forward.4} parent=31 // pred_region
        _
      $region40: #{bottleneck_forward.4} parent=31 // pred_fallthru
        _
    $region32: #{bottleneck_forward.4} parent=5 // pred_fallthru
      _
    %p315 = scmp.le.s32.totalorder 2, %s11
    // Predicated region
    $region41: #{bottleneck_forward.4} parent=5 // pred_check
      %p316 = pneg %p315
    $region42: #{bottleneck_forward.4} parent=5 // pred_check_branch
      %318 = sbr.rel (%p316) target = $region44
    $region43: #{bottleneck_forward.4} parent=5 // pred_region
      %s319 = ssub.s32 %s11, 2
      // Predicated region
      $region45: #{bottleneck_forward.4} parent=43 // pred_check
        %p320 = pneg %p108
      $region46: #{bottleneck_forward.4} parent=43 // pred_check_branch
        %322 = sbr.rel (%p320) target = $region48
      $region47: #{bottleneck_forward.4} parent=43 // pred_region
        %p323 = scmp.lt.s32.totalorder %s17, 1
        %s324 = scalar_select %p323, %s17, 1
        %s325 = smul.addr %s324, 4
        %s326 = scalar_lea.vmem %s3, %s325
      $region48: #{bottleneck_forward.4} parent=43 // pred_fallthru
        _
      // Predicated region
      $region49: #{bottleneck_forward.4} parent=43 // pred_check
        %p327 = pneg %p134
      $region50: #{bottleneck_forward.4} parent=43 // pred_check_branch
        %329 = sbr.rel (%p327) target = $region52
      $region51: #{bottleneck_forward.4} parent=43 // pred_region
        %p330 = scmp.lt.s32.totalorder %s17, 1
        %s331 = scalar_select %p330, %s17, 1
        %s332 = smul.addr %s331, 2
        %s333 = smul.addr %s332, 8
        %s334 = scalar_lea.vmem %s4, %s333
      $region52: #{bottleneck_forward.4} parent=43 // pred_fallthru
        _
    $region44: #{bottleneck_forward.4} parent=5 // pred_fallthru
      _
  $region6: #{bottleneck_forward.4} parent=0 // loop_footer
    %s15 = sadd.s32 1, %s11
  $region7: #{bottleneck_forward.4} parent=0 // loop_footer_branch
    %10 = sbr.rel target = $region3
  $region8: #{bottleneck_forward.4} parent=0 // loop_exit
    _

// kernel: bottleneck_forward.7
$region0: #{bottleneck_forward.7}
  #allocation0 [shape = 'u32[]', space=smem, size = 0x4, offset = 0x4, fixed_abs, tag = 'smem constant byte address 0x4 - core index']
  #allocation1 [shape = 'u32[72,128]{1,0:T(1,128)}', space=vmem, size = 0x9000, scoped, tag = 'internal scratch']
  %s0 = inlined_call_operand.vmem [shape: f32[4,8,16], index: 0, kind: input, shape index: {}]
  %s1 = inlined_call_operand.vmem [shape: bf16[4,16,16], index: 1, kind: input, shape index: {}]
  %s2 = inlined_call_operand.vmem [shape: bf16[16,8], index: 2, kind: input, shape index: {}]
  %s3 = inlined_call_operand.vmem [shape: f32[16,1], index: 3, kind: input, shape index: {}]
  %s4 = inlined_call_operand.vmem [shape: f32[16,1], index: 4, kind: input, shape index: {}]
  %s5 = inlined_call_operand.vmem [shape: f32[16,1], index: 5, kind: input, shape index: {}]
  %s6 = inlined_call_operand.vmem [shape: f32[16,1], index: 6, kind: input, shape index: {}]
  %s7 = inlined_call_operand.hbm [shape: f32[4,16,16], index: 7, kind: output, shape index: {}]
  %s8 = sld [smem:[#allocation0]]
  $region61: #{bottleneck_forward.7} parent=0
    _
  %s10 = ssub.s32 1, %s8
  %s11 = scalar_select 0, %s10, %s8
  $region1: #{bottleneck_forward.7} parent=0
    #allocation2 [shape = 'u8[32768]{0}', space=vmem, size = 0x8000, scoped, tag = 'output window, operand 0']
    #allocation3 [shape = 's32[2]{0}', space=sflag, size = 0x8, scoped, tag = 'scoped memory for bottleneck_forward.7']
    %12 = vsyncpa [#allocation3], 0
    %s13 = scalar_lea.sflag [#allocation3], 1
    %14 = vsyncpa %s13, 0
    loop: start=0, step=1, limit=4
    $region2: #{bottleneck_forward.7} parent=1 // loop_pre_header
      _
    $region3: #{bottleneck_forward.7} parent=1 // loop_header
      %s16 = sphi 0, %s20
      %p17 = scmp.ge.s32.totalorder %s16, 4
      %s26 = sphi 0, %s28
      %s29 = sphi 0, %s26
      %s30 = sphi 0, %s29
      %s46 = sphi 0, %s30
      %s52 = sphi 0, %s54
      %s55 = sphi 0, %s52
      %s56 = sphi 0, %s55
      %s72 = sphi 0, %s56
      %s76 = sphi 0, %s76
      %s78 = sphi 0, %s76
      %s79 = sphi 0, %s78
      %s93 = sphi 0, %s79
      %s97 = sphi 0, %s97
      %s99 = sphi 0, %s97
      %s100 = sphi 0, %s99
      %s114 = sphi 0, %s100
      %s118 = sphi 0, %s118
      %s120 = sphi 0, %s118
      %s121 = sphi 0, %s120
      %s135 = sphi 0, %s121
      %s139 = sphi 0, %s139
      %s141 = sphi 0, %s139
      %s142 = sphi 0, %s141
      %s156 = sphi 0, %s142
      %s160 = sphi 0, %s160
      %s162 = sphi 0, %s160
      %s163 = sphi 0, %s162
      %s177 = sphi 0, %s163
      %s183 = sphi 0, %s185
      %s186 = sphi 0, %s183
      %s187 = sphi 0, %s186
      %s203 = sphi 0, %s187
    $region4: #{bottleneck_forward.7} parent=1 // loop_header_branch
      %19 = sbr.rel (%p17) target = $region8
    $region5: #{bottleneck_forward.7} parent=1 // loop_body
      %s21 = ssub.s32 %s16, 1
      %s22 = ssub.s32 %s16, 2
      %s23 = sadd.s32 %s16, 1
      %s24 = ssub.s32 %s16, %s23
      %p25 = scmp.eq.s32.totalorder %s24, 0
      %s27 = sadd.s32 %s26, 1
      %s28 = scalar_select %p25, %s26, %s27
      %p31 = pneg %p25
      %p32 = scmp.eq.s32.totalorder %s16, 1
      %p33 = por %p31, %p32
      %p34 = scmp.ne.s32.totalorder %s26, %s29
      %p35 = scmp.eq.s32.totalorder %s16, 0
      %p36 = por %p34, %p35
      %p37 = scmp.ne.s32.totalorder %s26, %s29
      %p38 = scmp.eq.s32.totalorder %s21, 1
      %p39 = por %p37, %p38
      %p40 = scmp.ne.s32.totalorder %s29, %s30
      %p41 = scmp.eq.s32.totalorder %s21, 0
      %p42 = por %p40, %p41
      %p43 = scmp.ne.s32.totalorder %s29, %s30
      %p44 = scmp.eq.s32.totalorder %s22, 1
      %p45 = por %p43, %p44
      %p47 = scmp.ne.s32.totalorder %s30, %s46
      %p48 = scmp.eq.s32.totalorder %s22, 0
      %p49 = por %p47, %p48
      %s50 = ssub.s32 %s16, %s23
      %p51 = scmp.eq.s32.totalorder %s50, 0
      %s53 = sadd.s32 %s52, 1
      %s54 = scalar_select %p51, %s52, %s53
      %p57 = pneg %p51
      %p58 = scmp.eq.s32.totalorder %s16, 1
      %p59 = por %p57, %p58
      %p60 = scmp.ne.s32.totalorder %s52, %s55
      %p61 = scmp.eq.s32.totalorder %s16, 0
      %p62 = por %p60, %p61
      %p63 = scmp.ne.s32.totalorder %s52, %s55
      %p64 = scmp.eq.s32.totalorder %s21, 1
      %p65 = por %p63, %p64
      %p66 = scmp.ne.s32.totalorder %s55, %s56
      %p67 = scmp.eq.s32.totalorder %s21, 0
      %p68 = por %p66, %p67
      %p69 = scmp.ne.s32.totalorder %s55, %s56
      %p70 = scmp.eq.s32.totalorder %s22, 1
      %p71 = por %p69, %p70
      %p73 = scmp.ne.s32.totalorder %s56, %s72
      %p74 = scmp.eq.s32.totalorder %s22, 0
      %p75 = por %p73, %p74
      %s77 = sadd.s32 %s76, 1
      %p80 = scmp.eq.s32.totalorder %s16, 1
      %p81 = scmp.ne.s32.totalorder %s76, %s78
      %p82 = scmp.eq.s32.totalorder %s16, 0
      %p83 = por %p81, %p82
      %p84 = scmp.ne.s32.totalorder %s76, %s78
      %p85 = scmp.eq.s32.totalorder %s21, 1
      %p86 = por %p84, %p85
      %p87 = scmp.ne.s32.totalorder %s78, %s79
      %p88 = scmp.eq.s32.totalorder %s21, 0
      %p89 = por %p87, %p88
      %p90 = scmp.ne.s32.totalorder %s78, %s79
      %p91 = scmp.eq.s32.totalorder %s22, 1
      %p92 = por %p90, %p91
      %p94 = scmp.ne.s32.totalorder %s79, %s93
      %p95 = scmp.eq.s32.totalorder %s22, 0
      %p96 = por %p94, %p95
      %s98 = sadd.s32 %s97, 1
      %p101 = scmp.eq.s32.totalorder %s16, 1
      %p102 = scmp.ne.s32.totalorder %s97, %s99
      %p103 = scmp.eq.s32.totalorder %s16, 0
      %p104 = por %p102, %p103
      %p105 = scmp.ne.s32.totalorder %s97, %s99
      %p106 = scmp.eq.s32.totalorder %s21, 1
      %p107 = por %p105, %p106
      %p108 = scmp.ne.s32.totalorder %s99, %s100
      %p109 = scmp.eq.s32.totalorder %s21, 0
      %p110 = por %p108, %p109
      %p111 = scmp.ne.s32.totalorder %s99, %s100
      %p112 = scmp.eq.s32.totalorder %s22, 1
      %p113 = por %p111, %p112
      %p115 = scmp.ne.s32.totalorder %s100, %s114
      %p116 = scmp.eq.s32.totalorder %s22, 0
      %p117 = por %p115, %p116
      %s119 = sadd.s32 %s118, 1
      %p122 = scmp.eq.s32.totalorder %s16, 1
      %p123 = scmp.ne.s32.totalorder %s118, %s120
      %p124 = scmp.eq.s32.totalorder %s16, 0
      %p125 = por %p123, %p124
      %p126 = scmp.ne.s32.totalorder %s118, %s120
      %p127 = scmp.eq.s32.totalorder %s21, 1
      %p128 = por %p126, %p127
      %p129 = scmp.ne.s32.totalorder %s120, %s121
      %p130 = scmp.eq.s32.totalorder %s21, 0
      %p131 = por %p129, %p130
      %p132 = scmp.ne.s32.totalorder %s120, %s121
      %p133 = scmp.eq.s32.totalorder %s22, 1
      %p134 = por %p132, %p133
      %p136 = scmp.ne.s32.totalorder %s121, %s135
      %p137 = scmp.eq.s32.totalorder %s22, 0
      %p138 = por %p136, %p137
      %s140 = sadd.s32 %s139, 1
      %p143 = scmp.eq.s32.totalorder %s16, 1
      %p144 = scmp.ne.s32.totalorder %s139, %s141
      %p145 = scmp.eq.s32.totalorder %s16, 0
      %p146 = por %p144, %p145
      %p147 = scmp.ne.s32.totalorder %s139, %s141
      %p148 = scmp.eq.s32.totalorder %s21, 1
      %p149 = por %p147, %p148
      %p150 = scmp.ne.s32.totalorder %s141, %s142
      %p151 = scmp.eq.s32.totalorder %s21, 0
      %p152 = por %p150, %p151
      %p153 = scmp.ne.s32.totalorder %s141, %s142
      %p154 = scmp.eq.s32.totalorder %s22, 1
      %p155 = por %p153, %p154
      %p157 = scmp.ne.s32.totalorder %s142, %s156
      %p158 = scmp.eq.s32.totalorder %s22, 0
      %p159 = por %p157, %p158
      %s161 = sadd.s32 %s160, 1
      %p164 = scmp.eq.s32.totalorder %s16, 1
      %p165 = scmp.ne.s32.totalorder %s160, %s162
      %p166 = scmp.eq.s32.totalorder %s16, 0
      %p167 = por %p165, %p166
      %p168 = scmp.ne.s32.totalorder %s160, %s162
      %p169 = scmp.eq.s32.totalorder %s21, 1
      %p170 = por %p168, %p169
      %p171 = scmp.ne.s32.totalorder %s162, %s163
      %p172 = scmp.eq.s32.totalorder %s21, 0
      %p173 = por %p171, %p172
      %p174 = scmp.ne.s32.totalorder %s162, %s163
      %p175 = scmp.eq.s32.totalorder %s22, 1
      %p176 = por %p174, %p175
      %p178 = scmp.ne.s32.totalorder %s163, %s177
      %p179 = scmp.eq.s32.totalorder %s22, 0
      %p180 = por %p178, %p179
      %s181 = ssub.s32 %s16, %s23
      %p182 = scmp.eq.s32.totalorder %s181, 0
      %s184 = sadd.s32 %s183, 1
      %s185 = scalar_select %p182, %s183, %s184
      %p188 = pneg %p182
      %p189 = scmp.eq.s32.totalorder %s16, 1
      %p190 = por %p188, %p189
      %p191 = scmp.ne.s32.totalorder %s183, %s186
      %p192 = scmp.eq.s32.totalorder %s16, 0
      %p193 = por %p191, %p192
      %p194 = scmp.ne.s32.totalorder %s183, %s186
      %p195 = scmp.eq.s32.totalorder %s21, 1
      %p196 = por %p194, %p195
      %p197 = scmp.ne.s32.totalorder %s186, %s187
      %p198 = scmp.eq.s32.totalorder %s21, 0
      %p199 = por %p197, %p198
      %p200 = scmp.ne.s32.totalorder %s186, %s187
      %p201 = scmp.eq.s32.totalorder %s22, 1
      %p202 = por %p200, %p201
      %p204 = scmp.ne.s32.totalorder %s187, %s203
      %p205 = scmp.eq.s32.totalorder %s22, 0
      %p206 = por %p204, %p205
      %p207 = scmp.le.s32.totalorder 1, %s16
      %p208 = scmp.lt.s32.totalorder %s16, 3
      %p209 = pnand %p207, %p208
      %p210 = pneg %p209
      // Predicated region
      $region9: #{bottleneck_forward.7} parent=5 // pred_check
        _
      $region10: #{bottleneck_forward.7} parent=5 // pred_check_branch
        %212 = sbr.rel (%p209) target = $region12
      $region11: #{bottleneck_forward.7} parent=5 // pred_region
        %s213 = ssub.s32 %s16, 1
        // Predicated region
        $region13: #{bottleneck_forward.7} parent=11 // pred_check
          %p214 = pneg %p89
        $region14: #{bottleneck_forward.7} parent=11 // pred_check_branch
          %216 = sbr.rel (%p214) target = $region16
        $region15: #{bottleneck_forward.7} parent=11 // pred_region
          _
        $region16: #{bottleneck_forward.7} parent=11 // pred_fallthru
          _
        // Predicated region
        $region17: #{bottleneck_forward.7} parent=11 // pred_check
          %p217 = pneg %p110
        $region18: #{bottleneck_forward.7} parent=11 // pred_check_branch
          %219 = sbr.rel (%p217) target = $region20
        $region19: #{bottleneck_forward.7} parent=11 // pred_region
          _
        $region20: #{bottleneck_forward.7} parent=11 // pred_fallthru
          _
        // Predicated region
        $region21: #{bottleneck_forward.7} parent=11 // pred_check
          %p220 = pneg %p131
        $region22: #{bottleneck_forward.7} parent=11 // pred_check_branch
          %222 = sbr.rel (%p220) target = $region24
        $region23: #{bottleneck_forward.7} parent=11 // pred_region
          _
        $region24: #{bottleneck_forward.7} parent=11 // pred_fallthru
          _
        // Predicated region
        $region25: #{bottleneck_forward.7} parent=11 // pred_check
          %p223 = pneg %p152
        $region26: #{bottleneck_forward.7} parent=11 // pred_check_branch
          %225 = sbr.rel (%p223) target = $region28
        $region27: #{bottleneck_forward.7} parent=11 // pred_region
          _
        $region28: #{bottleneck_forward.7} parent=11 // pred_fallthru
          _
        // Predicated region
        $region29: #{bottleneck_forward.7} parent=11 // pred_check
          %p226 = pneg %p173
        $region30: #{bottleneck_forward.7} parent=11 // pred_check_branch
          %228 = sbr.rel (%p226) target = $region32
        $region31: #{bottleneck_forward.7} parent=11 // pred_region
          _
        $region32: #{bottleneck_forward.7} parent=11 // pred_fallthru
          _
      $region12: #{bottleneck_forward.7} parent=5 // pred_fallthru
        _
      %p229 = scmp.lt.s32.totalorder %s16, 2
      // Predicated region
      $region33: #{bottleneck_forward.7} parent=5 // pred_check
        %p230 = pneg %p229
      $region34: #{bottleneck_forward.7} parent=5 // pred_check_branch
        %232 = sbr.rel (%p230) target = $region36
      $region35: #{bottleneck_forward.7} parent=5 // pred_region
        // Predicated region
        $region37: #{bottleneck_forward.7} parent=35 // pred_check
          %p233 = pneg %p36
        $region38: #{bottleneck_forward.7} parent=35 // pred_check_branch
          %235 = sbr.rel (%p233) target = $region40
        $region39: #{bottleneck_forward.7} parent=35 // pred_region
          %s236 = smul.u32 2, %s16
          %p237 = scmp.lt.s32.totalorder %s236, 3
          %s238 = scalar_select %p237, %s236, 3
          %s239 = smul.addr %s238, 8
          %s240 = scalar_lea.vmem %s0, %s239
          %s241 = smul.u32 2, %s16
        $region40: #{bottleneck_forward.7} parent=35 // pred_fallthru
          _
        // Predicated region
        $region41: #{bottleneck_forward.7} parent=35 // pred_check
          %p242 = pneg %p62
        $region42: #{bottleneck_forward.7} parent=35 // pred_check_branch
          %244 = sbr.rel (%p242) target = $region44
        $region43: #{bottleneck_forward.7} parent=35 // pred_region
          %s245 = smul.u32 2, %s16
          %p246 = scmp.lt.s32.totalorder %s245, 3
          %s247 = scalar_select %p246, %s245, 3
          %s248 = smul.addr %s247, 2
          %s249 = smul.addr %s248, 4
          %s250 = scalar_lea.vmem %s1, %s249
          %s251 = smul.u32 2, %s16
        $region44: #{bottleneck_forward.7} parent=35 // pred_fallthru
          _
      $region36: #{bottleneck_forward.7} parent=5 // pred_fallthru
        _
      %p252 = scmp.le.s32.totalorder 1, %s16
      %p253 = scmp.lt.s32.totalorder %s16, 3
      %p254 = pnand %p252, %p253
      %p255 = pneg %p254
      // Predicated region
      $region45: #{bottleneck_forward.7} parent=5 // pred_check
        _
      $region46: #{bottleneck_forward.7} parent=5 // pred_check_branch
        %257 = sbr.rel (%p254) target = $region48
      $region47: #{bottleneck_forward.7} parent=5 // pred_region
        %s258 = ssub.s32 %s16, 1
        %s259 = smul.u32 2, %s21
        %p260 = scmp.lt.s32.totalorder %s259, 3
        %s261 = scalar_select %p260, %s259, 3
        %s262 = smul.addr %s261, 8
        %s263 = scalar_lea.vmem %s0, %s262
        %p264 = pneg %p42
        %p265 = pneg %p39
        %s266 = smul.u32 2, %s21
        %p267 = scmp.lt.s32.totalorder %s266, 3
        %s268 = scalar_select %p267, %s266, 3
        %s269 = smul.addr %s268, 2
        %s270 = smul.addr %s269, 4
        %s271 = scalar_lea.vmem %s1, %s270
        %p272 = pneg %p68
        %p273 = pneg %p65
        %p274 = pneg %p89
        %p275 = pneg %p86
        %p276 = pneg %p110
        %p277 = pneg %p107
        %p278 = pneg %p131
        %p279 = pneg %p128
        %p280 = pneg %p152
        %p281 = pneg %p149
        %p282 = pneg %p173
        %p283 = pneg %p170
        %p284 = pneg %p199
        %p285 = pneg %p196
        %s286 = sand.u32 %s186, 1
        %s287 = scalar_lea.sflag [#allocation3], %s286
        %s288 = sand.u32 %s186, 1
        %s289 = smul.addr %s288, 32
        %s290 = scalar_lea.vmem [#allocation2], %s289
        %s291 = smul.u32 2, %s21
        %p292 = scmp.lt.s32.totalorder %s291, 3
        %s293 = scalar_select %p292, %s291, 3
        %s294 = smul.addr %s293, 8
        %s295 = scalar_lea.vmem %s0, %s294
        %s296 = smul.u32 2, %s21
        %s297 = smul.u32 2, %s21
        %p298 = scmp.lt.s32.totalorder %s297, 3
        %s299 = scalar_select %p298, %s297, 3
        %s300 = smul.addr %s299, 2
        %s301 = smul.addr %s300, 4
        %s302 = scalar_lea.vmem %s1, %s301
        %s303 = smul.u32 2, %s21
        %s304 = smul.u32 2, %s21
        %v306 = vld [vmem:[%s295] sm:$0xff]
        %s307 = scalar_lea.vmem %s295, 8
        %v308 = vld [vmem:[%s307] sm:$0xff]
        %310 = vrot.lane.b32.xlu0 %v308, 16
        %v311 = vpop.permute.xlu0 %310
        %vm313 = vcmask 130048
        %v314 = vsel %vm313, %v306, %v311
        %v315 = vpack.c.bf16 %v314, %v314
        %v316 = vld [vmem:[%s2] sm:$0xf]
        %v317 = vld [vmem:[%s2 + $0x4] sm:$0xf]
        %v320 = vunpack.c.l.b16 %v316
        %v321 = vunpack.c.l.b16 %v317
        %v322 = vpack.c.b16 %v321, %v320
        %vm323 = vcmask 64512
        %v325 = vsel %vm323, %v322, 0
        %vm327 = vcmask 1043456
        %v329 = vsel %vm327, %v315, 0
        %331 = vmatpush.bf16.msra.mxu0 0
        %332 = vmatpush.bf16.msra.mxu0 0
        %333 = vmatpush.bf16.msra.mxu0 0
        %334 = vmatpush.bf16.msra.mxu0 0
        %335 = vmatpush.bf16.msra.mxu0 0
        %336 = vmatpush.bf16.msra.mxu0 0
        %337 = vmatpush.bf16.msra.mxu0 0
        %338 = vmatpush.bf16.msra.mxu0 %v329
        %339 = vmatmul.bf16.gmra.mxu0 %v325
        %v340 = vpop.f32.mrf.mxu0
        %v341 = vadd.f32 0.0, %v340
        %v342 = vpop.f32.mrf.mxu0
        %v343 = vadd.f32 0.0, %v342
        %344 = vdwg.mxu0
        %v345 = vld [vmem:[%s5] sm:$0xff]
        %v346 = vld [vmem:[%s5 + $0x8] sm:$0xff]
        %348 = vset.pattern.permute.xlu0 0
        %349 = vperm.xlu0 %348, %v345
        %v350 = vpop.permute.xlu0 %349
        %353 = vset.pattern.permute.xlu0 0
        %354 = vperm.xlu0 %353, %v346
        %v355 = vpop.permute.xlu0 %354
        %v357 = vmul.f32 %v341, %v350
        %v358 = vmul.f32 %v343, %v355
        %v359 = vld [vmem:[%s6] sm:$0xff]
        %v360 = vld [vmem:[%s6 + $0x8] sm:$0xff]
        %362 = vset.pattern.permute.xlu0 0
        %363 = vperm.xlu0 %362, %v359
        %v364 = vpop.permute.xlu0 %363
        %367 = vset.pattern.permute.xlu0 0
        %368 = vperm.xlu0 %367, %v360
        %v369 = vpop.permute.xlu0 %368
        %v371 = vadd.f32 %v357, %v364
        %v372 = vadd.f32 %v358, %v369
        %v373 = vld [vmem:[%s302] sm:$0xf]
        %v374 = vld [vmem:[%s302 + $0x4] sm:$0xf]
        %s375 = scalar_lea.vmem %s302, 8
        %v376 = vld [vmem:[%s375] sm:$0xf]
        %v377 = vld [vmem:[%s375 + $0x4] sm:$0xf]
        %v380 = vunpack.c.l.b16 %v373
        %v381 = vunpack.c.l.b16 %v374
        %v382 = vpack.c.b16 %v381, %v380
        %v385 = vunpack.c.l.b16 %v376
        %v386 = vunpack.c.l.b16 %v377
        %v387 = vpack.c.b16 %v386, %v385
        %388 = vrot.lane.b32.xlu0 %v387, 16
        %v389 = vpop.permute.xlu0 %388
        %v392 = vsel %vm313, %v382, %v389
        %v394 = vunpack.c.l.bf16 %v392
        %v395 = vunpack.c.h.bf16 %v392
        %v396 = vld [vmem:[%s3] sm:$0xff]
        %v397 = vld [vmem:[%s3 + $0x8] sm:$0xff]
        %399 = vset.pattern.permute.xlu0 0
        %400 = vperm.xlu0 %399, %v396
        %v401 = vpop.permute.xlu0 %400
        %404 = vset.pattern.permute.xlu0 0
        %405 = vperm.xlu0 %404, %v397
        %v406 = vpop.permute.xlu0 %405
        %v408 = vmul.f32 %v394, %v401
        %v409 = vmul.f32 %v395, %v406
        %v410 = vld [vmem:[%s4] sm:$0xff]
        %v411 = vld [vmem:[%s4 + $0x8] sm:$0xff]
        %413 = vset.pattern.permute.xlu0 0
        %414 = vperm.xlu0 %413, %v410
        %v415 = vpop.permute.xlu0 %414
        %418 = vset.pattern.permute.xlu0 0
        %419 = vperm.xlu0 %418, %v411
        %v420 = vpop.permute.xlu0 %419
        %v422 = vadd.f32 %v408, %v415
        %v423 = vadd.f32 %v409, %v420
        %v424 = vadd.f32 %v422, %v371
        %v425 = vadd.f32 %v423, %v372
        %v426 = vmax.f32 %v424, 0.0
        %v427 = vmax.f32 %v425, 0.0
        %428 = vst.msk [vmem:[%s290] sm:$0xff] %vm313, %v426
        %429 = vst.msk [vmem:[%s290 + $0x8] sm:$0xff] %vm313, %v427
        %432 = vrot.lane.b32.xlu0 %v426, 112
        %v433 = vpop.permute.xlu0 %432
        %434 = vrot.lane.b32.xlu0 %v427, 112
        %v435 = vpop.permute.xlu0 %434
        %s438 = scalar_lea.vmem %s290, 16 [#allocation2]
        %439 = vst.msk [vmem:[%s438] sm:$0xff] %vm313, %v433
        %440 = vst.msk [vmem:[%s438 + $0x8] sm:$0xff] %vm313, %v435
        %s441 = sand.u32 %s186, 1
        %s442 = scalar_lea.sflag [#allocation3], %s441
        %s443 = sand.u32 %s186, 1
        %s444 = smul.addr %s443, 32
        %s445 = scalar_lea.vmem [#allocation2], %s444
        // Predicated region
        $region49: #{bottleneck_forward.7} parent=47 // pred_check
          %p446 = pneg %p196
        $region50: #{bottleneck_forward.7} parent=47 // pred_check_branch
          %448 = sbr.rel (%p446) target = $region52
        $region51: #{bottleneck_forward.7} parent=47 // pred_region
          %s449 = smul.u32 2, %s21
          %451 = vsyncadd %s442, 0
          %s452 = smul.addr %s449, 2
          %s453 = smul.addr %s452, 8
          %s454 = scalar_lea.hbm %s7, %s453
          %s455 = sshll.u32 %s445, 4
          %s456 = int_to_ptr.vmem [resolvable:$true] %s455
          %s457 = sshll.u32 %s454, 4
          %s458 = int_to_ptr.hbm [resolvable:$true] %s457
          %463 = dma.vmem_to_hbm [thread:$0]  %s456, 512, %s458, %s442, 128, 128, 8
        $region52: #{bottleneck_forward.7} parent=47 // pred_fallthru
          _
      $region48: #{bottleneck_forward.7} parent=5 // pred_fallthru
        _
      %p464 = scmp.le.s32.totalorder 2, %s16
      // Predicated region
      $region53: #{bottleneck_forward.7} parent=5 // pred_check
        %p465 = pneg %p464
      $region54: #{bottleneck_forward.7} parent=5 // pred_check_branch
        %467 = sbr.rel (%p465) target = $region56
      $region55: #{bottleneck_forward.7} parent=5 // pred_region
        %s468 = ssub.s32 %s16, 2
        // Predicated region
        $region57: #{bottleneck_forward.7} parent=55 // pred_check
          %p469 = pneg %p202
        $region58: #{bottleneck_forward.7} parent=55 // pred_check_branch
          %471 = sbr.rel (%p469) target = $region60
        $region59: #{bottleneck_forward.7} parent=55 // pred_region
          %s472 = sand.u32 %s187, 1
          %s473 = scalar_lea.sflag [#allocation3], %s472
          %s474 = sand.u32 %s187, 1
          %s475 = smul.addr %s474, 32
          %s476 = scalar_lea.vmem [#allocation2], %s475
          %478 = dma.done %s473, 512
        $region60: #{bottleneck_forward.7} parent=55 // pred_fallthru
          _
      $region56: #{bottleneck_forward.7} parent=5 // pred_fallthru
        _
    $region6: #{bottleneck_forward.7} parent=1 // loop_footer
      %s20 = sadd.s32 1, %s16
    $region7: #{bottleneck_forward.7} parent=1 // loop_footer_branch
      %15 = sbr.rel target = $region3
    $region8: #{bottleneck_forward.7} parent=1 // loop_exit
      _
    %479 = vsyncpa [#allocation3], 1
    %s480 = scalar_lea.sflag [#allocation3], 1
    %481 = vsyncpa %s480, 1

// kernel: bottleneck_forward.5
$region0: #{bottleneck_forward.5}
  #allocation0 [shape = 'u32[]', space=smem, size = 0x4, offset = 0x4, fixed_abs, tag = 'smem constant byte address 0x4 - core index']
  #allocation1 [shape = 'u32[72,128]{1,0:T(1,128)}', space=vmem, size = 0x9000, scoped, tag = 'internal scratch']
  %s0 = inlined_call_operand.vmem [shape: f32[4,8,16], index: 0, kind: input, shape index: {}]
  %s1 = inlined_call_operand.vmem [shape: bf16[4,8], index: 1, kind: input, shape index: {}]
  %s2 = inlined_call_operand.vmem [shape: f32[4,1], index: 2, kind: input, shape index: {}]
  %s3 = inlined_call_operand.vmem [shape: f32[4,1], index: 3, kind: input, shape index: {}]
  %s4 = inlined_call_operand.vmem [shape: bf16[4,12], index: 4, kind: input, shape index: {}]
  %s5 = inlined_call_operand.vmem [shape: bf16[4,4,16], index: 5, kind: output, shape index: {0}]
  %s6 = inlined_call_operand.vmem [shape: f32[2,4,2], index: 6, kind: output, shape index: {1}]
  %7 = xla_tuple %s5, %s6
  %s8 = sld [smem:[#allocation0]]
  $region61: #{bottleneck_forward.5} parent=0
    _
  %s10 = ssub.s32 1, %s8
  %s11 = scalar_select 0, %s10, %s8
  loop: start=0, step=1, limit=4
  $region2: #{bottleneck_forward.5} parent=0 // loop_pre_header
    _
  $region3: #{bottleneck_forward.5} parent=0 // loop_header
    %s13 = sphi 0, %s17
    %p14 = scmp.ge.s32.totalorder %s13, 4
    %s23 = sphi 0, %s25
    %s26 = sphi 0, %s23
    %s27 = sphi 0, %s26
    %s43 = sphi 0, %s27
    %s47 = sphi 0, %s47
    %s49 = sphi 0, %s47
    %s50 = sphi 0, %s49
    %s64 = sphi 0, %s50
    %s68 = sphi 0, %s68
    %s70 = sphi 0, %s68
    %s71 = sphi 0, %s70
    %s85 = sphi 0, %s71
    %s89 = sphi 0, %s89
    %s91 = sphi 0, %s89
    %s92 = sphi 0, %s91
    %s106 = sphi 0, %s92
    %s110 = sphi 0, %s110
    %s112 = sphi 0, %s110
    %s113 = sphi 0, %s112
    %s127 = sphi 0, %s113
    %s133 = sphi 0, %s135
    %s136 = sphi 0, %s133
    %s137 = sphi 0, %s136
    %s153 = sphi 0, %s137
    %s159 = sphi 0, %s161
    %s162 = sphi 0, %s159
    %s163 = sphi 0, %s162
    %s179 = sphi 0, %s163
  $region4: #{bottleneck_forward.5} parent=0 // loop_header_branch
    %16 = sbr.rel (%p14) target = $region8
  $region5: #{bottleneck_forward.5} parent=0 // loop_body
    %s18 = ssub.s32 %s13, 1
    %s19 = ssub.s32 %s13, 2
    %s20 = sadd.s32 %s13, 1
    %s21 = ssub.s32 %s13, %s20
    %p22 = scmp.eq.s32.totalorder %s21, 0
    %s24 = sadd.s32 %s23, 1
    %s25 = scalar_select %p22, %s23, %s24
    %p28 = pneg %p22
    %p29 = scmp.eq.s32.totalorder %s13, 1
    %p30 = por %p28, %p29
    %p31 = scmp.ne.s32.totalorder %s23, %s26
    %p32 = scmp.eq.s32.totalorder %s13, 0
    %p33 = por %p31, %p32
    %p34 = scmp.ne.s32.totalorder %s23, %s26
    %p35 = scmp.eq.s32.totalorder %s18, 1
    %p36 = por %p34, %p35
    %p37 = scmp.ne.s32.totalorder %s26, %s27
    %p38 = scmp.eq.s32.totalorder %s18, 0
    %p39 = por %p37, %p38
    %p40 = scmp.ne.s32.totalorder %s26, %s27
    %p41 = scmp.eq.s32.totalorder %s19, 1
    %p42 = por %p40, %p41
    %p44 = scmp.ne.s32.totalorder %s27, %s43
    %p45 = scmp.eq.s32.totalorder %s19, 0
    %p46 = por %p44, %p45
    %s48 = sadd.s32 %s47, 1
    %p51 = scmp.eq.s32.totalorder %s13, 1
    %p52 = scmp.ne.s32.totalorder %s47, %s49
    %p53 = scmp.eq.s32.totalorder %s13, 0
    %p54 = por %p52, %p53
    %p55 = scmp.ne.s32.totalorder %s47, %s49
    %p56 = scmp.eq.s32.totalorder %s18, 1
    %p57 = por %p55, %p56
    %p58 = scmp.ne.s32.totalorder %s49, %s50
    %p59 = scmp.eq.s32.totalorder %s18, 0
    %p60 = por %p58, %p59
    %p61 = scmp.ne.s32.totalorder %s49, %s50
    %p62 = scmp.eq.s32.totalorder %s19, 1
    %p63 = por %p61, %p62
    %p65 = scmp.ne.s32.totalorder %s50, %s64
    %p66 = scmp.eq.s32.totalorder %s19, 0
    %p67 = por %p65, %p66
    %s69 = sadd.s32 %s68, 1
    %p72 = scmp.eq.s32.totalorder %s13, 1
    %p73 = scmp.ne.s32.totalorder %s68, %s70
    %p74 = scmp.eq.s32.totalorder %s13, 0
    %p75 = por %p73, %p74
    %p76 = scmp.ne.s32.totalorder %s68, %s70
    %p77 = scmp.eq.s32.totalorder %s18, 1
    %p78 = por %p76, %p77
    %p79 = scmp.ne.s32.totalorder %s70, %s71
    %p80 = scmp.eq.s32.totalorder %s18, 0
    %p81 = por %p79, %p80
    %p82 = scmp.ne.s32.totalorder %s70, %s71
    %p83 = scmp.eq.s32.totalorder %s19, 1
    %p84 = por %p82, %p83
    %p86 = scmp.ne.s32.totalorder %s71, %s85
    %p87 = scmp.eq.s32.totalorder %s19, 0
    %p88 = por %p86, %p87
    %s90 = sadd.s32 %s89, 1
    %p93 = scmp.eq.s32.totalorder %s13, 1
    %p94 = scmp.ne.s32.totalorder %s89, %s91
    %p95 = scmp.eq.s32.totalorder %s13, 0
    %p96 = por %p94, %p95
    %p97 = scmp.ne.s32.totalorder %s89, %s91
    %p98 = scmp.eq.s32.totalorder %s18, 1
    %p99 = por %p97, %p98
    %p100 = scmp.ne.s32.totalorder %s91, %s92
    %p101 = scmp.eq.s32.totalorder %s18, 0
    %p102 = por %p100, %p101
    %p103 = scmp.ne.s32.totalorder %s91, %s92
    %p104 = scmp.eq.s32.totalorder %s19, 1
    %p105 = por %p103, %p104
    %p107 = scmp.ne.s32.totalorder %s92, %s106
    %p108 = scmp.eq.s32.totalorder %s19, 0
    %p109 = por %p107, %p108
    %s111 = sadd.s32 %s110, 1
    %p114 = scmp.eq.s32.totalorder %s13, 1
    %p115 = scmp.ne.s32.totalorder %s110, %s112
    %p116 = scmp.eq.s32.totalorder %s13, 0
    %p117 = por %p115, %p116
    %p118 = scmp.ne.s32.totalorder %s110, %s112
    %p119 = scmp.eq.s32.totalorder %s18, 1
    %p120 = por %p118, %p119
    %p121 = scmp.ne.s32.totalorder %s112, %s113
    %p122 = scmp.eq.s32.totalorder %s18, 0
    %p123 = por %p121, %p122
    %p124 = scmp.ne.s32.totalorder %s112, %s113
    %p125 = scmp.eq.s32.totalorder %s19, 1
    %p126 = por %p124, %p125
    %p128 = scmp.ne.s32.totalorder %s113, %s127
    %p129 = scmp.eq.s32.totalorder %s19, 0
    %p130 = por %p128, %p129
    %s131 = ssub.s32 %s13, %s20
    %p132 = scmp.eq.s32.totalorder %s131, 0
    %s134 = sadd.s32 %s133, 1
    %s135 = scalar_select %p132, %s133, %s134
    %p138 = pneg %p132
    %p139 = scmp.eq.s32.totalorder %s13, 1
    %p140 = por %p138, %p139
    %p141 = scmp.ne.s32.totalorder %s133, %s136
    %p142 = scmp.eq.s32.totalorder %s13, 0
    %p143 = por %p141, %p142
    %p144 = scmp.ne.s32.totalorder %s133, %s136
    %p145 = scmp.eq.s32.totalorder %s18, 1
    %p146 = por %p144, %p145
    %p147 = scmp.ne.s32.totalorder %s136, %s137
    %p148 = scmp.eq.s32.totalorder %s18, 0
    %p149 = por %p147, %p148
    %p150 = scmp.ne.s32.totalorder %s136, %s137
    %p151 = scmp.eq.s32.totalorder %s19, 1
    %p152 = por %p150, %p151
    %p154 = scmp.ne.s32.totalorder %s137, %s153
    %p155 = scmp.eq.s32.totalorder %s19, 0
    %p156 = por %p154, %p155
    %s157 = ssub.s32 %s13, %s20
    %p158 = scmp.eq.s32.totalorder %s157, 0
    %s160 = sadd.s32 %s159, 1
    %s161 = scalar_select %p158, %s159, %s160
    %p164 = pneg %p158
    %p165 = scmp.eq.s32.totalorder %s13, 1
    %p166 = por %p164, %p165
    %p167 = scmp.ne.s32.totalorder %s159, %s162
    %p168 = scmp.eq.s32.totalorder %s13, 0
    %p169 = por %p167, %p168
    %p170 = scmp.ne.s32.totalorder %s159, %s162
    %p171 = scmp.eq.s32.totalorder %s18, 1
    %p172 = por %p170, %p171
    %p173 = scmp.ne.s32.totalorder %s162, %s163
    %p174 = scmp.eq.s32.totalorder %s18, 0
    %p175 = por %p173, %p174
    %p176 = scmp.ne.s32.totalorder %s162, %s163
    %p177 = scmp.eq.s32.totalorder %s19, 1
    %p178 = por %p176, %p177
    %p180 = scmp.ne.s32.totalorder %s163, %s179
    %p181 = scmp.eq.s32.totalorder %s19, 0
    %p182 = por %p180, %p181
    %p183 = scmp.le.s32.totalorder 1, %s13
    %p184 = scmp.lt.s32.totalorder %s13, 3
    %p185 = pnand %p183, %p184
    %p186 = pneg %p185
    // Predicated region
    $region9: #{bottleneck_forward.5} parent=5 // pred_check
      _
    $region10: #{bottleneck_forward.5} parent=5 // pred_check_branch
      %188 = sbr.rel (%p185) target = $region12
    $region11: #{bottleneck_forward.5} parent=5 // pred_region
      %s189 = ssub.s32 %s13, 1
      // Predicated region
      $region13: #{bottleneck_forward.5} parent=11 // pred_check
        %p190 = pneg %p60
      $region14: #{bottleneck_forward.5} parent=11 // pred_check_branch
        %192 = sbr.rel (%p190) target = $region16
      $region15: #{bottleneck_forward.5} parent=11 // pred_region
        _
      $region16: #{bottleneck_forward.5} parent=11 // pred_fallthru
        _
      // Predicated region
      $region17: #{bottleneck_forward.5} parent=11 // pred_check
        %p193 = pneg %p81
      $region18: #{bottleneck_forward.5} parent=11 // pred_check_branch
        %195 = sbr.rel (%p193) target = $region20
      $region19: #{bottleneck_forward.5} parent=11 // pred_region
        _
      $region20: #{bottleneck_forward.5} parent=11 // pred_fallthru
        _
      // Predicated region
      $region21: #{bottleneck_forward.5} parent=11 // pred_check
        %p196 = pneg %p102
      $region22: #{bottleneck_forward.5} parent=11 // pred_check_branch
        %198 = sbr.rel (%p196) target = $region24
      $region23: #{bottleneck_forward.5} parent=11 // pred_region
        _
      $region24: #{bottleneck_forward.5} parent=11 // pred_fallthru
        _
      // Predicated region
      $region25: #{bottleneck_forward.5} parent=11 // pred_check
        %p199 = pneg %p123
      $region26: #{bottleneck_forward.5} parent=11 // pred_check_branch
        %201 = sbr.rel (%p199) target = $region28
      $region27: #{bottleneck_forward.5} parent=11 // pred_region
        _
      $region28: #{bottleneck_forward.5} parent=11 // pred_fallthru
        _
    $region12: #{bottleneck_forward.5} parent=5 // pred_fallthru
      _
    %p202 = scmp.lt.s32.totalorder %s13, 2
    // Predicated region
    $region29: #{bottleneck_forward.5} parent=5 // pred_check
      %p203 = pneg %p202
    $region30: #{bottleneck_forward.5} parent=5 // pred_check_branch
      %205 = sbr.rel (%p203) target = $region32
    $region31: #{bottleneck_forward.5} parent=5 // pred_region
      // Predicated region
      $region33: #{bottleneck_forward.5} parent=31 // pred_check
        %p206 = pneg %p33
      $region34: #{bottleneck_forward.5} parent=31 // pred_check_branch
        %208 = sbr.rel (%p206) target = $region36
      $region35: #{bottleneck_forward.5} parent=31 // pred_region
        %s209 = smul.u32 2, %s13
        %p210 = scmp.lt.s32.totalorder %s209, 3
        %s211 = scalar_select %p210, %s209, 3
        %s212 = smul.addr %s211, 8
        %s213 = scalar_lea.vmem %s0, %s212
        %s214 = smul.u32 2, %s13
      $region36: #{bottleneck_forward.5} parent=31 // pred_fallthru
        _
    $region32: #{bottleneck_forward.5} parent=5 // pred_fallthru
      _
    %p215 = scmp.le.s32.totalorder 1, %s13
    %p216 = scmp.lt.s32.totalorder %s13, 3
    %p217 = pnand %p215, %p216
    %p218 = pneg %p217
    // Predicated region
    $region37: #{bottleneck_forward.5} parent=5 // pred_check
      _
    $region38: #{bottleneck_forward.5} parent=5 // pred_check_branch
      %220 = sbr.rel (%p217) target = $region40
    $region39: #{bottleneck_forward.5} parent=5 // pred_region
      %s221 = ssub.s32 %s13, 1
      %s222 = smul.u32 2, %s18
      %p223 = scmp.lt.s32.totalorder %s222, 3
      %s224 = scalar_select %p223, %s222, 3
      %s225 = smul.addr %s224, 8
      %s226 = scalar_lea.vmem %s0, %s225
      %p227 = pneg %p39
      %p228 = pneg %p36
      %p229 = pneg %p60
      %p230 = pneg %p57
      %p231 = pneg %p81
      %p232 = pneg %p78
      %p233 = pneg %p102
      %p234 = pneg %p99
      %p235 = pneg %p123
      %p236 = pneg %p120
      %p237 = pneg %p149
      %p238 = pneg %p146
      %s239 = smul.u32 2, %s18
      %p240 = scmp.lt.s32.totalorder %s239, 3
      %s241 = scalar_select %p240, %s239, 3
      %s242 = smul.addr %s241, 2
      %s243 = scalar_lea.vmem %s5, %s242
      %p244 = pneg %p175
      %p245 = pneg %p172
      %p246 = scmp.lt.s32.totalorder %s18, 1
      %s247 = scalar_select %p246, %s18, 1
      %s248 = smul.addr %s247, 4
      %s249 = scalar_lea.vmem %s6, %s248
      %s250 = smul.u32 2, %s18
      %p251 = scmp.lt.s32.totalorder %s250, 3
      %s252 = scalar_select %p251, %s250, 3
      %s253 = smul.addr %s252, 8
      %s254 = scalar_lea.vmem %s0, %s253
      %s255 = smul.u32 2, %s18
      %s256 = smul.u32 2, %s18
      %p257 = scmp.lt.s32.totalorder %s256, 3
      %s258 = scalar_select %p257, %s256, 3
      %s259 = smul.addr %s258, 2
      %s260 = scalar_lea.vmem %s5, %s259
      %s261 = smul.u32 2, %s18
      %p262 = scmp.lt.s32.totalorder %s18, 1
      %s263 = scalar_select %p262, %s18, 1
      %s264 = smul.addr %s263, 4
      %s265 = scalar_lea.vmem %s6, %s264
      %v267 = vld [vmem:[%s254] sm:$0xff]
      %s268 = scalar_lea.vmem %s254, 8
      %v269 = vld [vmem:[%s268] sm:$0xff]
      %271 = vrot.lane.b32.xlu0 %v269, 16
      %v272 = vpop.permute.xlu0 %271
      %vm274 = vcmask 130048
      %v275 = vsel %vm274, %v267, %v272
      %v276 = vpack.c.bf16 %v275, %v275
      %v277 = vld [vmem:[%s1] sm:$0x3]
      %vm278 = vcmask 64512
      %v280 = vsel %vm278, %v277, 0
      %vm282 = vcmask 1043456
      %v284 = vsel %vm282, %v276, 0
      %286 = vmatpush.bf16.msra.mxu0 0
      %287 = vmatpush.bf16.msra.mxu0 0
      %288 = vmatpush.bf16.msra.mxu0 0
      %289 = vmatpush.bf16.msra.mxu0 0
      %290 = vmatpush.bf16.msra.mxu0 0
      %291 = vmatpush.bf16.msra.mxu0 0
      %292 = vmatpush.bf16.msra.mxu0 0
      %293 = vmatpush.bf16.msra.mxu0 %v284
      %294 = vmatmul.bf16.gmra.mxu0 %v280
      %v295 = vpop.f32.mrf.mxu0
      %v296 = vadd.f32 0.0, %v295
      %v297 = vpop.f32.mrf.mxu0
      %298 = vdwg.mxu0
      %v299 = vld [vmem:[%s2] sm:$0xf]
      %301 = vset.pattern.permute.xlu0 0
      %302 = vperm.xlu0 %301, %v299
      %v303 = vpop.permute.xlu0 %302
      %v305 = vmul.f32 %v296, %v303
      %v306 = vld [vmem:[%s3] sm:$0xf]
      %308 = vset.pattern.permute.xlu0 0
      %309 = vperm.xlu0 %308, %v306
      %v310 = vpop.permute.xlu0 %309
      %v312 = vadd.f32 %v305, %v310
      %v313 = vmax.f32 %v312, 0.0
      %315 = vrot.lane.b32.xlu0 %v313, 1
      %v316 = vpop.permute.xlu0 %315
      %vm318 = vcmask 7168
      %v319 = vsel %vm318, 0.0, %v316
      %320 = vrot.lane.b32.xlu0 %v313, 127
      %v321 = vpop.permute.xlu0 %320
      %vm323 = vcmask 121856
      %v324 = vsel %vm323, %v321, 0.0
      %325 = vrot.lane.b32.xlu0 %v313, 113
      %v326 = vpop.permute.xlu0 %325
      %v328 = vsel %vm318, 0.0, %v326
      %329 = vrot.lane.b32.xlu0 %v313, 111
      %v330 = vpop.permute.xlu0 %329
      %v332 = vsel %vm323, %v330, 0.0
      %334 = vrot.lane.b32.xlu0 %v328, 16
      %v335 = vpop.permute.xlu0 %334
      %v337 = vsel %vm274, %v319, %v335
      %339 = vrot.lane.b32.xlu0 %v332, 16
      %v340 = vpop.permute.xlu0 %339
      %v342 = vsel %vm274, %v324, %v340
      %v343 = vrot.slane %v313, 4
      %v345 = vsel %vm282, %v337, %v343
      %v346 = vpack.c.bf16 %v342, %v345
      %v347 = vld [vmem:[%s4] sm:$0x3]
      %vm348 = vcmask 97280
      %v350 = vsel %vm348, %v347, 0
      %vm352 = vcmask 1045504
      %v354 = vsel %vm352, %v346, 0
      %356 = vmatpush.bf16.msra.mxu0 0
      %357 = vmatpush.bf16.msra.mxu0 0
      %358 = vmatpush.bf16.msra.mxu0 0
      %359 = vmatpush.bf16.msra.mxu0 0
      %360 = vmatpush.bf16.msra.mxu0 0
      %361 = vmatpush.bf16.msra.mxu0 0
      %362 = vmatpush.bf16.msra.mxu0 0
      %363 = vmatpush.bf16.msra.mxu0 %v354
      %364 = vmatmul.bf16.gmra.mxu0 %v350
      %v365 = vpop.f32.mrf.mxu0
      %v366 = vadd.f32 0.0, %v365
      %v367 = vpop.f32.mrf.mxu0
      %368 = vdwg.mxu0
      %v369 = vpack.c.bf16 %v366, %v366
      %vm370 = vcmask 123904
      %371 = vst.msk [vmem:[%s260] sm:$0x3] %vm370, %v369
      %v373 = vrot.slane %v369, 2
      %vm374 = vcmask 1041408
      %v377 = vsel %vm374, %v369, %v373
      %379 = vrot.lane.b32.xlu0 %v377, 112
      %v380 = vpop.permute.xlu0 %379
      %s382 = scalar_lea.vmem %s260, 2
      %383 = vst.msk [vmem:[%s382] sm:$0x3] %vm370, %v380
      %vm384 = vcmask 257024
      %v385 = vsel %vm384, %v366, 0.0
      %386 = vadd.xlane.f32.xlu0 %v385
      %v387 = vpop.xlane.xlu0 %386
      %v388 = vmul.f32 %v366, %v366
      %v389 = vsel %vm384, %v388, 0.0
      %390 = vadd.xlane.f32.xlu0 %v389
      %v391 = vpop.xlane.xlu0 %390
      %v392 = vsel %vm318, %v387, %v391
      %vm393 = vcmask 11264
      %394 = vst.msk [vmem:[%s265] sm:$0xf] %vm393, %v392
      %s395 = smul.u32 2, %s18
      %p396 = scmp.lt.s32.totalorder %s395, 3
      %s397 = scalar_select %p396, %s395, 3
      %s398 = smul.addr %s397, 2
      %s399 = scalar_lea.vmem %s5, %s398
      %p400 = scmp.lt.s32.totalorder %s18, 1
      %s401 = scalar_select %p400, %s18, 1
      %s402 = smul.addr %s401, 4
      %s403 = scalar_lea.vmem %s6, %s402
      // Predicated region
      $region41: #{bottleneck_forward.5} parent=39 // pred_check
        %p404 = pneg %p146
      $region42: #{bottleneck_forward.5} parent=39 // pred_check_branch
        %406 = sbr.rel (%p404) target = $region44
      $region43: #{bottleneck_forward.5} parent=39 // pred_region
        %s407 = smul.u32 2, %s18
      $region44: #{bottleneck_forward.5} parent=39 // pred_fallthru
        _
      // Predicated region
      $region45: #{bottleneck_forward.5} parent=39 // pred_check
        %p408 = pneg %p172
      $region46: #{bottleneck_forward.5} parent=39 // pred_check_branch
        %410 = sbr.rel (%p408) target = $region48
      $region47: #{bottleneck_forward.5} parent=39 // pred_region
        _
      $region48: #{bottleneck_forward.5} parent=39 // pred_fallthru
        _
    $region40: #{bottleneck_forward.5} parent=5 // pred_fallthru
      _
    %p411 = scmp.le.s32.totalorder 2, %s13
    // Predicated region
    $region49: #{bottleneck_forward.5} parent=5 // pred_check
      %p412 = pneg %p411
    $region50: #{bottleneck_forward.5} parent=5 // pred_check_branch
      %414 = sbr.rel (%p412) target = $region52
    $region51: #{bottleneck_forward.5} parent=5 // pred_region
      %s415 = ssub.s32 %s13, 2
      // Predicated region
      $region53: #{bottleneck_forward.5} parent=51 // pred_check
        %p416 = pneg %p152
      $region54: #{bottleneck_forward.5} parent=51 // pred_check_branch
        %418 = sbr.rel (%p416) target = $region56
      $region55: #{bottleneck_forward.5} parent=51 // pred_region
        %s419 = smul.u32 2, %s19
        %p420 = scmp.lt.s32.totalorder %s419, 3
        %s421 = scalar_select %p420, %s419, 3
        %s422 = smul.addr %s421, 2
        %s423 = scalar_lea.vmem %s5, %s422
      $region56: #{bottleneck_forward.5} parent=51 // pred_fallthru
        _
      // Predicated region
      $region57: #{bottleneck_forward.5} parent=51 // pred_check
        %p424 = pneg %p178
      $region58: #{bottleneck_forward.5} parent=51 // pred_check_branch
        %426 = sbr.rel (%p424) target = $region60
      $region59: #{bottleneck_forward.5} parent=51 // pred_region
        %p427 = scmp.lt.s32.totalorder %s19, 1
        %s428 = scalar_select %p427, %s19, 1
        %s429 = smul.addr %s428, 4
        %s430 = scalar_lea.vmem %s6, %s429
      $region60: #{bottleneck_forward.5} parent=51 // pred_fallthru
        _
    $region52: #{bottleneck_forward.5} parent=5 // pred_fallthru
      _
  $region6: #{bottleneck_forward.5} parent=0 // loop_footer
    %s17 = sadd.s32 1, %s13
  $region7: #{bottleneck_forward.5} parent=0 // loop_footer_branch
    %12 = sbr.rel target = $region3
  $region8: #{bottleneck_forward.5} parent=0 // loop_exit
    _

// kernel: bottleneck_forward.6
$region0: #{bottleneck_forward.6}
  #allocation0 [shape = 'u32[]', space=smem, size = 0x4, offset = 0x4, fixed_abs, tag = 'smem constant byte address 0x4 - core index']
  #allocation1 [shape = 'u32[72,128]{1,0:T(1,128)}', space=vmem, size = 0x9000, scoped, tag = 'internal scratch']
  %s0 = inlined_call_operand.vmem [shape: bf16[4,4,16], index: 0, kind: input, shape index: {}]
  %s1 = inlined_call_operand.vmem [shape: f32[4,1], index: 1, kind: input, shape index: {}]
  %s2 = inlined_call_operand.vmem [shape: f32[4,1], index: 2, kind: input, shape index: {}]
  %s3 = inlined_call_operand.vmem [shape: bf16[16,4], index: 3, kind: input, shape index: {}]
  %s4 = inlined_call_operand.vmem [shape: bf16[4,16,16], index: 4, kind: output, shape index: {0}]
  %s5 = inlined_call_operand.vmem [shape: f32[2,16,2], index: 5, kind: output, shape index: {1}]
  %6 = xla_tuple %s4, %s5
  %s7 = sld [smem:[#allocation0]]
  $region57: #{bottleneck_forward.6} parent=0
    _
  %s9 = ssub.s32 1, %s7
  %s10 = scalar_select 0, %s9, %s7
  loop: start=0, step=1, limit=4
  $region2: #{bottleneck_forward.6} parent=0 // loop_pre_header
    _
  $region3: #{bottleneck_forward.6} parent=0 // loop_header
    %s12 = sphi 0, %s16
    %p13 = scmp.ge.s32.totalorder %s12, 4
    %s22 = sphi 0, %s24
    %s25 = sphi 0, %s22
    %s26 = sphi 0, %s25
    %s42 = sphi 0, %s26
    %s46 = sphi 0, %s46
    %s48 = sphi 0, %s46
    %s49 = sphi 0, %s48
    %s63 = sphi 0, %s49
    %s67 = sphi 0, %s67
    %s69 = sphi 0, %s67
    %s70 = sphi 0, %s69
    %s84 = sphi 0, %s70
    %s88 = sphi 0, %s88
    %s90 = sphi 0, %s88
    %s91 = sphi 0, %s90
    %s105 = sphi 0, %s91
    %s111 = sphi 0, %s113
    %s114 = sphi 0, %s111
    %s115 = sphi 0, %s114
    %s131 = sphi 0, %s115
    %s137 = sphi 0, %s139
    %s140 = sphi 0, %s137
    %s141 = sphi 0, %s140
    %s157 = sphi 0, %s141
  $region4: #{bottleneck_forward.6} parent=0 // loop_header_branch
    %15 = sbr.rel (%p13) target = $region8
  $region5: #{bottleneck_forward.6} parent=0 // loop_body
    %s17 = ssub.s32 %s12, 1
    %s18 = ssub.s32 %s12, 2
    %s19 = sadd.s32 %s12, 1
    %s20 = ssub.s32 %s12, %s19
    %p21 = scmp.eq.s32.totalorder %s20, 0
    %s23 = sadd.s32 %s22, 1
    %s24 = scalar_select %p21, %s22, %s23
    %p27 = pneg %p21
    %p28 = scmp.eq.s32.totalorder %s12, 1
    %p29 = por %p27, %p28
    %p30 = scmp.ne.s32.totalorder %s22, %s25
    %p31 = scmp.eq.s32.totalorder %s12, 0
    %p32 = por %p30, %p31
    %p33 = scmp.ne.s32.totalorder %s22, %s25
    %p34 = scmp.eq.s32.totalorder %s17, 1
    %p35 = por %p33, %p34
    %p36 = scmp.ne.s32.totalorder %s25, %s26
    %p37 = scmp.eq.s32.totalorder %s17, 0
    %p38 = por %p36, %p37
    %p39 = scmp.ne.s32.totalorder %s25, %s26
    %p40 = scmp.eq.s32.totalorder %s18, 1
    %p41 = por %p39, %p40
    %p43 = scmp.ne.s32.totalorder %s26, %s42
    %p44 = scmp.eq.s32.totalorder %s18, 0
    %p45 = por %p43, %p44
    %s47 = sadd.s32 %s46, 1
    %p50 = scmp.eq.s32.totalorder %s12, 1
    %p51 = scmp.ne.s32.totalorder %s46, %s48
    %p52 = scmp.eq.s32.totalorder %s12, 0
    %p53 = por %p51, %p52
    %p54 = scmp.ne.s32.totalorder %s46, %s48
    %p55 = scmp.eq.s32.totalorder %s17, 1
    %p56 = por %p54, %p55
    %p57 = scmp.ne.s32.totalorder %s48, %s49
    %p58 = scmp.eq.s32.totalorder %s17, 0
    %p59 = por %p57, %p58
    %p60 = scmp.ne.s32.totalorder %s48, %s49
    %p61 = scmp.eq.s32.totalorder %s18, 1
    %p62 = por %p60, %p61
    %p64 = scmp.ne.s32.totalorder %s49, %s63
    %p65 = scmp.eq.s32.totalorder %s18, 0
    %p66 = por %p64, %p65
    %s68 = sadd.s32 %s67, 1
    %p71 = scmp.eq.s32.totalorder %s12, 1
    %p72 = scmp.ne.s32.totalorder %s67, %s69
    %p73 = scmp.eq.s32.totalorder %s12, 0
    %p74 = por %p72, %p73
    %p75 = scmp.ne.s32.totalorder %s67, %s69
    %p76 = scmp.eq.s32.totalorder %s17, 1
    %p77 = por %p75, %p76
    %p78 = scmp.ne.s32.totalorder %s69, %s70
    %p79 = scmp.eq.s32.totalorder %s17, 0
    %p80 = por %p78, %p79
    %p81 = scmp.ne.s32.totalorder %s69, %s70
    %p82 = scmp.eq.s32.totalorder %s18, 1
    %p83 = por %p81, %p82
    %p85 = scmp.ne.s32.totalorder %s70, %s84
    %p86 = scmp.eq.s32.totalorder %s18, 0
    %p87 = por %p85, %p86
    %s89 = sadd.s32 %s88, 1
    %p92 = scmp.eq.s32.totalorder %s12, 1
    %p93 = scmp.ne.s32.totalorder %s88, %s90
    %p94 = scmp.eq.s32.totalorder %s12, 0
    %p95 = por %p93, %p94
    %p96 = scmp.ne.s32.totalorder %s88, %s90
    %p97 = scmp.eq.s32.totalorder %s17, 1
    %p98 = por %p96, %p97
    %p99 = scmp.ne.s32.totalorder %s90, %s91
    %p100 = scmp.eq.s32.totalorder %s17, 0
    %p101 = por %p99, %p100
    %p102 = scmp.ne.s32.totalorder %s90, %s91
    %p103 = scmp.eq.s32.totalorder %s18, 1
    %p104 = por %p102, %p103
    %p106 = scmp.ne.s32.totalorder %s91, %s105
    %p107 = scmp.eq.s32.totalorder %s18, 0
    %p108 = por %p106, %p107
    %s109 = ssub.s32 %s12, %s19
    %p110 = scmp.eq.s32.totalorder %s109, 0
    %s112 = sadd.s32 %s111, 1
    %s113 = scalar_select %p110, %s111, %s112
    %p116 = pneg %p110
    %p117 = scmp.eq.s32.totalorder %s12, 1
    %p118 = por %p116, %p117
    %p119 = scmp.ne.s32.totalorder %s111, %s114
    %p120 = scmp.eq.s32.totalorder %s12, 0
    %p121 = por %p119, %p120
    %p122 = scmp.ne.s32.totalorder %s111, %s114
    %p123 = scmp.eq.s32.totalorder %s17, 1
    %p124 = por %p122, %p123
    %p125 = scmp.ne.s32.totalorder %s114, %s115
    %p126 = scmp.eq.s32.totalorder %s17, 0
    %p127 = por %p125, %p126
    %p128 = scmp.ne.s32.totalorder %s114, %s115
    %p129 = scmp.eq.s32.totalorder %s18, 1
    %p130 = por %p128, %p129
    %p132 = scmp.ne.s32.totalorder %s115, %s131
    %p133 = scmp.eq.s32.totalorder %s18, 0
    %p134 = por %p132, %p133
    %s135 = ssub.s32 %s12, %s19
    %p136 = scmp.eq.s32.totalorder %s135, 0
    %s138 = sadd.s32 %s137, 1
    %s139 = scalar_select %p136, %s137, %s138
    %p142 = pneg %p136
    %p143 = scmp.eq.s32.totalorder %s12, 1
    %p144 = por %p142, %p143
    %p145 = scmp.ne.s32.totalorder %s137, %s140
    %p146 = scmp.eq.s32.totalorder %s12, 0
    %p147 = por %p145, %p146
    %p148 = scmp.ne.s32.totalorder %s137, %s140
    %p149 = scmp.eq.s32.totalorder %s17, 1
    %p150 = por %p148, %p149
    %p151 = scmp.ne.s32.totalorder %s140, %s141
    %p152 = scmp.eq.s32.totalorder %s17, 0
    %p153 = por %p151, %p152
    %p154 = scmp.ne.s32.totalorder %s140, %s141
    %p155 = scmp.eq.s32.totalorder %s18, 1
    %p156 = por %p154, %p155
    %p158 = scmp.ne.s32.totalorder %s141, %s157
    %p159 = scmp.eq.s32.totalorder %s18, 0
    %p160 = por %p158, %p159
    %p161 = scmp.le.s32.totalorder 1, %s12
    %p162 = scmp.lt.s32.totalorder %s12, 3
    %p163 = pnand %p161, %p162
    %p164 = pneg %p163
    // Predicated region
    $region9: #{bottleneck_forward.6} parent=5 // pred_check
      _
    $region10: #{bottleneck_forward.6} parent=5 // pred_check_branch
      %166 = sbr.rel (%p163) target = $region12
    $region11: #{bottleneck_forward.6} parent=5 // pred_region
      %s167 = ssub.s32 %s12, 1
      // Predicated region
      $region13: #{bottleneck_forward.6} parent=11 // pred_check
        %p168 = pneg %p59
      $region14: #{bottleneck_forward.6} parent=11 // pred_check_branch
        %170 = sbr.rel (%p168) target = $region16
      $region15: #{bottleneck_forward.6} parent=11 // pred_region
        _
      $region16: #{bottleneck_forward.6} parent=11 // pred_fallthru
        _
      // Predicated region
      $region17: #{bottleneck_forward.6} parent=11 // pred_check
        %p171 = pneg %p80
      $region18: #{bottleneck_forward.6} parent=11 // pred_check_branch
        %173 = sbr.rel (%p171) target = $region20
      $region19: #{bottleneck_forward.6} parent=11 // pred_region
        _
      $region20: #{bottleneck_forward.6} parent=11 // pred_fallthru
        _
      // Predicated region
      $region21: #{bottleneck_forward.6} parent=11 // pred_check
        %p174 = pneg %p101
      $region22: #{bottleneck_forward.6} parent=11 // pred_check_branch
        %176 = sbr.rel (%p174) target = $region24
      $region23: #{bottleneck_forward.6} parent=11 // pred_region
        _
      $region24: #{bottleneck_forward.6} parent=11 // pred_fallthru
        _
    $region12: #{bottleneck_forward.6} parent=5 // pred_fallthru
      _
    %p177 = scmp.lt.s32.totalorder %s12, 2
    // Predicated region
    $region25: #{bottleneck_forward.6} parent=5 // pred_check
      %p178 = pneg %p177
    $region26: #{bottleneck_forward.6} parent=5 // pred_check_branch
      %180 = sbr.rel (%p178) target = $region28
    $region27: #{bottleneck_forward.6} parent=5 // pred_region
      // Predicated region
      $region29: #{bottleneck_forward.6} parent=27 // pred_check
        %p181 = pneg %p32
      $region30: #{bottleneck_forward.6} parent=27 // pred_check_branch
        %183 = sbr.rel (%p181) target = $region32
      $region31: #{bottleneck_forward.6} parent=27 // pred_region
        %s184 = smul.u32 2, %s12
        %p185 = scmp.lt.s32.totalorder %s184, 3
        %s186 = scalar_select %p185, %s184, 3
        %s187 = smul.addr %s186, 2
        %s188 = scalar_lea.vmem %s0, %s187
        %s189 = smul.u32 2, %s12
      $region32: #{bottleneck_forward.6} parent=27 // pred_fallthru
        _
    $region28: #{bottleneck_forward.6} parent=5 // pred_fallthru
      _
    %p190 = scmp.le.s32.totalorder 1, %s12
    %p191 = scmp.lt.s32.totalorder %s12, 3
    %p192 = pnand %p190, %p191
    %p193 = pneg %p192
    // Predicated region
    $region33: #{bottleneck_forward.6} parent=5 // pred_check
      _
    $region34: #{bottleneck_forward.6} parent=5 // pred_check_branch
      %195 = sbr.rel (%p192) target = $region36
    $region35: #{bottleneck_forward.6} parent=5 // pred_region
      %s196 = ssub.s32 %s12, 1
      %s197 = smul.u32 2, %s17
      %p198 = scmp.lt.s32.totalorder %s197, 3
      %s199 = scalar_select %p198, %s197, 3
      %s200 = smul.addr %s199, 2
      %s201 = scalar_lea.vmem %s0, %s200
      %p202 = pneg %p38
      %p203 = pneg %p35
      %p204 = pneg %p59
      %p205 = pneg %p56
      %p206 = pneg %p80
      %p207 = pneg %p77
      %p208 = pneg %p101
      %p209 = pneg %p98
      %p210 = pneg %p127
      %p211 = pneg %p124
      %s212 = smul.u32 2, %s17
      %p213 = scmp.lt.s32.totalorder %s212, 3
      %s214 = scalar_select %p213, %s212, 3
      %s215 = smul.addr %s214, 2
      %s216 = smul.addr %s215, 4
      %s217 = scalar_lea.vmem %s4, %s216
      %p218 = pneg %p153
      %p219 = pneg %p150
      %p220 = scmp.lt.s32.totalorder %s17, 1
      %s221 = scalar_select %p220, %s17, 1
      %s222 = smul.addr %s221, 2
      %s223 = smul.addr %s222, 8
      %s224 = scalar_lea.vmem %s5, %s223
      %s225 = smul.u32 2, %s17
      %p226 = scmp.lt.s32.totalorder %s225, 3
      %s227 = scalar_select %p226, %s225, 3
      %s228 = smul.addr %s227, 2
      %s229 = scalar_lea.vmem %s0, %s228
      %s230 = smul.u32 2, %s17
      %s231 = smul.u32 2, %s17
      %p232 = scmp.lt.s32.totalorder %s231, 3
      %s233 = scalar_select %p232, %s231, 3
      %s234 = smul.addr %s233, 2
      %s235 = smul.addr %s234, 4
      %s236 = scalar_lea.vmem %s4, %s235
      %s237 = smul.u32 2, %s17
      %p238 = scmp.lt.s32.totalorder %s17, 1
      %s239 = scalar_select %p238, %s17, 1
      %s240 = smul.addr %s239, 2
      %s241 = smul.addr %s240, 8
      %s242 = scalar_lea.vmem %s5, %s241
      %v244 = vld [vmem:[%s229] sm:$0x3]
      %s245 = scalar_lea.vmem %s229, 2
      %v246 = vld [vmem:[%s245] sm:$0x3]
      %248 = vst [vmem:[#allocation1] ss:$4 sm:$0xff] %v246
      %v249 = vld.sshfl [vmem:[#allocation1] sm:$0xff pattern:$0x73625140]
      %251 = vrot.lane.b32.xlu0 %v249, 16
      %v252 = vpop.permute.xlu0 %251
      %vm253 = vcmask 130048
      %v256 = vsel %vm253, %v244, %v252
      %v258 = vunpack.c.l.bf16 %v256
      %v259 = vld [vmem:[%s1] sm:$0xf]
      %261 = vset.pattern.permute.xlu0 0
      %262 = vperm.xlu0 %261, %v259
      %v263 = vpop.permute.xlu0 %262
      %v265 = vmul.f32 %v258, %v263
      %v266 = vld [vmem:[%s2] sm:$0xf]
      %268 = vset.pattern.permute.xlu0 0
      %269 = vperm.xlu0 %268, %v266
      %v270 = vpop.permute.xlu0 %269
      %v272 = vadd.f32 %v265, %v270
      %v273 = vmax.f32 %v272, 0.0
      %v274 = vpack.c.bf16 %v273, %v273
      %v275 = vld [vmem:[%s3] sm:$0xf]
      %v276 = vld [vmem:[%s3 + $0x4] sm:$0xf]
      %v279 = vunpack.c.l.b16 %v275
      %v280 = vunpack.c.l.b16 %v276
      %v281 = vpack.c.b16 %v280, %v279
      %vm282 = vcmask 31744
      %v284 = vsel %vm282, %v281, 0
      %vm286 = vcmask 1041408
      %v288 = vsel %vm286, %v274, 0
      %290 = vmatpush.bf16.msra.mxu0 0
      %291 = vmatpush.bf16.msra.mxu0 0
      %292 = vmatpush.bf16.msra.mxu0 0
      %293 = vmatpush.bf16.msra.mxu0 0
      %294 = vmatpush.bf16.msra.mxu0 0
      %295 = vmatpush.bf16.msra.mxu0 0
      %296 = vmatpush.bf16.msra.mxu0 0
      %297 = vmatpush.bf16.msra.mxu0 %v288
      %298 = vmatmul.bf16.gmra.mxu0 %v284
      %v299 = vpop.f32.mrf.mxu0
      %v300 = vadd.f32 0.0, %v299
      %v301 = vpop.f32.mrf.mxu0
      %v302 = vadd.f32 0.0, %v301
      %303 = vdwg.mxu0
      %v304 = vpack.c.bf16 %v300, %v300
      %v305 = vpack.c.bf16 %v302, %v302
      %vm306 = vcmask 125952
      %307 = vst.msk [vmem:[%s236] sm:$0xf] %vm306, %v304
      %308 = vst.msk [vmem:[%s236 + $0x4] sm:$0xf] %vm306, %v305
      %311 = vrot.lane.b32.xlu0 %v304, 112
      %v312 = vpop.permute.xlu0 %311
      %313 = vrot.lane.b32.xlu0 %v305, 112
      %v314 = vpop.permute.xlu0 %313
      %s317 = scalar_lea.vmem %s236, 8
      %318 = vst.msk [vmem:[%s317] sm:$0xf] %vm306, %v312
      %319 = vst.msk [vmem:[%s317 + $0x4] sm:$0xf] %vm306, %v314
      %vm320 = vcmask 261120
      %v321 = vsel %vm320, %v300, 0.0
      %322 = vadd.xlane.f32.xlu0 %v321
      %v323 = vpop.xlane.xlu0 %322
      %v324 = vsel %vm320, %v302, 0.0
      %325 = vadd.xlane.f32.xlu0 %v324
      %v326 = vpop.xlane.xlu0 %325
      %v327 = vmul.f32 %v300, %v300
      %v328 = vmul.f32 %v302, %v302
      %v329 = vsel %vm320, %v327, 0.0
      %330 = vadd.xlane.f32.xlu0 %v329
      %v331 = vpop.xlane.xlu0 %330
      %v332 = vsel %vm320, %v328, 0.0
      %333 = vadd.xlane.f32.xlu0 %v332
      %v334 = vpop.xlane.xlu0 %333
      %vm335 = vcmask 7168
      %v336 = vsel %vm335, %v323, %v331
      %v337 = vsel %vm335, %v326, %v334
      %vm338 = vcmask 15360
      %339 = vst.msk [vmem:[%s242] sm:$0xff] %vm338, %v336
      %340 = vst.msk [vmem:[%s242 + $0x8] sm:$0xff] %vm338, %v337
      %s341 = smul.u32 2, %s17
      %p342 = scmp.lt.s32.totalorder %s341, 3
      %s343 = scalar_select %p342, %s341, 3
      %s344 = smul.addr %s343, 2
      %s345 = smul.addr %s344, 4
      %s346 = scalar_lea.vmem %s4, %s345
      %p347 = scmp.lt.s32.totalorder %s17, 1
      %s348 = scalar_select %p347, %s17, 1
      %s349 = smul.addr %s348, 2
      %s350 = smul.addr %s349, 8
      %s351 = scalar_lea.vmem %s5, %s350
      // Predicated region
      $region37: #{bottleneck_forward.6} parent=35 // pred_check
        %p352 = pneg %p124
      $region38: #{bottleneck_forward.6} parent=35 // pred_check_branch
        %354 = sbr.rel (%p352) target = $region40
      $region39: #{bottleneck_forward.6} parent=35 // pred_region
        %s355 = smul.u32 2, %s17
      $region40: #{bottleneck_forward.6} parent=35 // pred_fallthru
        _
      // Predicated region
      $region41: #{bottleneck_forward.6} parent=35 // pred_check
        %p356 = pneg %p150
      $region42: #{bottleneck_forward.6} parent=35 // pred_check_branch
        %358 = sbr.rel (%p356) target = $region44
      $region43: #{bottleneck_forward.6} parent=35 // pred_region
        _
      $region44: #{bottleneck_forward.6} parent=35 // pred_fallthru
        _
    $region36: #{bottleneck_forward.6} parent=5 // pred_fallthru
      _
    %p359 = scmp.le.s32.totalorder 2, %s12
    // Predicated region
    $region45: #{bottleneck_forward.6} parent=5 // pred_check
      %p360 = pneg %p359
    $region46: #{bottleneck_forward.6} parent=5 // pred_check_branch
      %362 = sbr.rel (%p360) target = $region48
    $region47: #{bottleneck_forward.6} parent=5 // pred_region
      %s363 = ssub.s32 %s12, 2
      // Predicated region
      $region49: #{bottleneck_forward.6} parent=47 // pred_check
        %p364 = pneg %p130
      $region50: #{bottleneck_forward.6} parent=47 // pred_check_branch
        %366 = sbr.rel (%p364) target = $region52
      $region51: #{bottleneck_forward.6} parent=47 // pred_region
        %s367 = smul.u32 2, %s18
        %p368 = scmp.lt.s32.totalorder %s367, 3
        %s369 = scalar_select %p368, %s367, 3
        %s370 = smul.addr %s369, 2
        %s371 = smul.addr %s370, 4
        %s372 = scalar_lea.vmem %s4, %s371
      $region52: #{bottleneck_forward.6} parent=47 // pred_fallthru
        _
      // Predicated region
      $region53: #{bottleneck_forward.6} parent=47 // pred_check
        %p373 = pneg %p156
      $region54: #{bottleneck_forward.6} parent=47 // pred_check_branch
        %375 = sbr.rel (%p373) target = $region56
      $region55: #{bottleneck_forward.6} parent=47 // pred_region
        %p376 = scmp.lt.s32.totalorder %s18, 1
        %s377 = scalar_select %p376, %s18, 1
        %s378 = smul.addr %s377, 2
        %s379 = smul.addr %s378, 8
        %s380 = scalar_lea.vmem %s5, %s379
      $region56: #{bottleneck_forward.6} parent=47 // pred_fallthru
        _
    $region48: #{bottleneck_forward.6} parent=5 // pred_fallthru
      _
  $region6: #{bottleneck_forward.6} parent=0 // loop_footer
    %s16 = sadd.s32 1, %s12
  $region7: #{bottleneck_forward.6} parent=0 // loop_footer_branch
    %11 = sbr.rel target = $region3
  $region8: #{bottleneck_forward.6} parent=0 // loop_exit
    _

</llo_original>
